<compile_context>
chip_gen: v7x
topology: tpu7x:2x2x1
jax: 0.10.0
libtpu: 0.0.40
codegen_flags: <defaults>
</compile_context>

<pallas_src>
import functools

import jax
import jax.numpy as jnp
from jax.experimental import pallas as pl
from jax.experimental.pallas import tpu as pltpu


def _round_up(v, m):
    return ((v + m - 1) // m) * m


def gcn_atp_kernel(adj_ref, xs_ref, drow_ref, w_ref, b_ref, o_ref, acc_ref):
    """One (row-block i, contraction-block k) grid step.

    adj_ref : (bm, bk)  int8   (A + I) tile, entries {0,1}
    xs_ref  : (bk, Fi)  bf16   D^{-(1-r)} * x rows for this k block
    drow_ref: (bm, 1)   f32    D^{-r} for this row block
    w_ref   : (Fi, Fo)  bf16   Linear weight, pre-transposed
    b_ref   : (1,  Fo)  f32    Linear bias
    o_ref   : (bm, Fo)         output tile
    acc_ref : (bm, Fi)  f32    VMEM accumulator ((A+I) @ (d_col * x))
    """
    k = pl.program_id(1)

    @pl.when(k == 0)
    def _init():
        acc_ref[...] = jnp.zeros_like(acc_ref)

    # int8 -> bf16 cast is VPU filler hidden under the adjacency DMA.
    acc_ref[...] += jnp.dot(adj_ref[...].astype(jnp.bfloat16), xs_ref[...],
                            preferred_element_type=jnp.float32)

    @pl.when(k == pl.num_programs(1) - 1)
    def _finalize():
        agg = drow_ref[...] * acc_ref[...]                  # row norm in f32
        out = jnp.dot(agg.astype(jnp.bfloat16), w_ref[...],
                      preferred_element_type=jnp.float32) + b_ref[...]
        o_ref[...] = out.astype(o_ref.dtype)


def _vmem_need_bytes(bm, bk, f_in_p, f_out_p, out_itemsize):
    """Conservative (everything double-buffered) VMEM footprint estimate."""
    adj = 2 * bm * bk * 1                       # int8 adjacency tile
    xs = 2 * bk * f_in_p * 2                    # bf16 scaled features
    drow = 2 * _round_up(bm, 8) * 128 * 4       # lane-padded (bm,1) f32
    w = 2 * f_in_p * f_out_p * 2                # bf16 weight
    b = 2 * 8 * f_out_p * 4                     # sublane-padded bias
    out = 2 * bm * f_out_p * out_itemsize
    acc = bm * f_in_p * 4
    return adj + xs + drow + w + b + out + acc


@functools.partial(jax.jit,
                   static_argnames=("r", "bm", "bk", "single_buffer_consts"))
def _gcn_atp_conv_impl(adj, x, weight, bias, *, r, bm, bk,
                       single_buffer_consts):
    n, f_in = x.shape
    f_out = weight.shape[0]
    out_dtype = x.dtype
    out_itemsize = jnp.dtype(out_dtype).itemsize

    # ---- tile sizes --------------------------------------------------------
    f_in_p = _round_up(f_in, 128)
    f_out_p = _round_up(f_out, 128)
    # >= 2 row blocks so the "parallel" axis can split across v7x's 2 TCs;
    # 32-aligned sublane dim keeps int8 adjacency tiles vreg-native.
    bm = max(32, min(int(bm), _round_up((n + 1) // 2, 32)))
    bk = max(128, min(int(bk), _round_up(n, 128)))
    bm = _round_up(bm, 32)
    bk = _round_up(bk, 128)

    # ---- VMEM budget (generation aware) ------------------------------------
    try:
        phys_vmem = int(pltpu.get_tpu_info().vmem_capacity_bytes)
    except Exception:  # conservative fallback (v7x-sized VMEM)
        phys_vmem = 64 * 1024 * 1024
    budget = int(phys_vmem * 0.7)
    min_bm, min_bk = 32, 128
    while _vmem_need_bytes(bm, bk, f_in_p, f_out_p, out_itemsize) > budget:
        if bk > min_bk and (bk >= bm or bm <= min_bm):
            bk = max(min_bk, (bk // 2) // 128 * 128)
        elif bm > min_bm:
            bm = max(min_bm, (bm // 2) // 32 * 32)
        else:
            break
    # TODO(synk): tile the projection over f_out (extra grid axis) when
    # f_in_p * f_out_p alone approaches the VMEM budget (very large F on v7x).
    vmem_limit = max(32 * 1024 * 1024,
                     min(int(phys_vmem * 0.75), 96 * 1024 * 1024))

    n_rows_p = _round_up(n, bm)
    n_cols_p = _round_up(n, bk)
    gi, gk = n_rows_p // bm, n_cols_p // bk

    # ---- compact int8 adjacency with self loops, padded independently ------
    adj_p = jnp.zeros((n_rows_p, n_cols_p), jnp.int8).at[:n, :n].set(
        adj.astype(jnp.int8))
    adj_p = adj_p + jnp.eye(n_rows_p, n_cols_p, dtype=jnp.int8)   # A + I

    # Degrees from the 1-byte adjacency (self loop included). Padded rows are
    # clamped to 1 so every scaling stays finite.
    deg = jnp.sum(adj_p, axis=1, dtype=jnp.int32)[:n].astype(jnp.float32)
    deg = jnp.maximum(deg, 1.0)
    d_row = deg ** (-float(r))
    d_col = deg ** (-(1.0 - float(r)))

    # Pre-scaled, pre-cast features: xs = D^{-(1-r)} x, bf16, done once.
    xs = (x.astype(jnp.float32) * d_col[:, None]).astype(jnp.bfloat16)
    xs_p = jnp.zeros((n_cols_p, f_in_p), jnp.bfloat16).at[:n, :f_in].set(xs)
    d_row_p = jnp.ones((n_rows_p, 1), jnp.float32).at[:n, 0].set(d_row)

    w_p = jnp.zeros((f_in_p, f_out_p), jnp.bfloat16).at[:f_in, :f_out].set(
        weight.T.astype(jnp.bfloat16))
    b_p = jnp.zeros((1, f_out_p), jnp.float32).at[0, :f_out].set(
        bias.astype(jnp.float32))

    const_kwargs = (dict(pipeline_mode=pl.Buffered(1))
                    if single_buffer_consts else {})

    grid_spec = pltpu.PrefetchScalarGridSpec(
        num_scalar_prefetch=0,
        grid=(gi, gk),
        in_specs=[
            pl.BlockSpec((bm, bk), lambda i, k: (i, k)),            # (A+I) tile
            pl.BlockSpec((bk, f_in_p), lambda i, k: (k, 0)),        # scaled x
            pl.BlockSpec((bm, 1), lambda i, k: (i, 0)),             # deg^{-r}
            pl.BlockSpec((f_in_p, f_out_p), lambda i, k: (0, 0),
                         **const_kwargs),                           # W^T
            pl.BlockSpec((1, f_out_p), lambda i, k: (0, 0),
                         **const_kwargs),                           # bias
        ],
        out_specs=pl.BlockSpec((bm, f_out_p), lambda i, k: (i, 0)),
        scratch_shapes=[pltpu.VMEM((bm, f_in_p), jnp.float32)],
    )

    cost = pl.CostEstimate(
        flops=(2 * n_rows_p * n_cols_p * f_in_p
               + 2 * n_rows_p * f_in_p * f_out_p),
        transcendentals=0,
        bytes_accessed=(n_rows_p * n_cols_p                   # int8 adjacency
                        + gi * n_cols_p * f_in_p * 2          # x re-streams
                        + f_in_p * f_out_p * 2                # weight
                        + n_rows_p * f_out_p * out_itemsize), # output
    )

    out_p = pl.pallas_call(
        gcn_atp_kernel,
        out_shape=jax.ShapeDtypeStruct((n_rows_p, f_out_p), out_dtype),
        grid_spec=grid_spec,
        compiler_params=pltpu.CompilerParams(
            dimension_semantics=("parallel", "arbitrary"),
            vmem_limit_bytes=vmem_limit),
        cost_estimate=cost,
    )(adj_p, xs_p, d_row_p, w_p, b_p)

    return out_p[:n, :f_out]


def gcn_atp_conv(adj, x, weight, bias, r, *, bm=512, bk=512):
    """Forward of GCNATPConv: Linear(D^{-r}(A+I)D^{-(1-r)} @ x).

    adj   : [N, N] dense {0,1} adjacency (no self loops; assumed symmetric)
    x     : [N, F_in]
    weight: [F_out, F_in]  (PyTorch nn.Linear layout)
    bias  : [F_out]
    """
    kwargs = dict(r=float(r), bm=int(bm), bk=int(bk))
    try:
        # Preferred: constant W / bias blocks single-buffered (VMEM saver,
        # matters most on v7x's 64 MiB VMEM).
        return _gcn_atp_conv_impl(adj, x, weight, bias,
                                  single_buffer_consts=True, **kwargs)
    except Exception:
        # Fallback if pipeline_mode=pl.Buffered(1) is not supported here.
        return _gcn_atp_conv_impl(adj, x, weight, bias,
                                  single_buffer_consts=False, **kwargs)


def reference(adj, x, weight, bias, r):
    """Pure-JAX f32 reference: Linear(D^{-r}(A+I)D^{-(1-r)} @ x)."""
    n = adj.shape[0]
    a = adj + jnp.eye(n, dtype=adj.dtype)
    deg = jnp.sum(a, axis=1)
    a_norm = (deg ** -r)[:, None] * a * (deg ** -(1.0 - r))[None, :]
    return (a_norm @ x) @ weight.T + bias[None, :]


if __name__ == "__main__":
    # Small deterministic example (module hyperparams: input_dim, output_dim, r).
    N, F_IN, F_OUT, R = 256, 32, 32, 0.5

    key = jax.random.PRNGKey(0)
    k_adj, k_x, k_w, k_b = jax.random.split(key, 4)

    # Random undirected graph as a dense {0,1} adjacency (no self loops).
    rnd = jax.random.uniform(k_adj, (N, N))
    adj = (rnd < 0.05).astype(jnp.float32)
    adj = jnp.maximum(adj, adj.T)
    adj = adj * (1.0 - jnp.eye(N, dtype=jnp.float32))

    x = jax.random.normal(k_x, (N, F_IN), dtype=jnp.float32)

    # Deterministic Linear(input_dim, output_dim) params (PyTorch uniform range).
    bound = 1.0 / (F_IN ** 0.5)
    weight = jax.random.uniform(k_w, (F_OUT, F_IN), minval=-bound, maxval=bound,
                                dtype=jnp.float32)
    bias = jax.random.uniform(k_b, (F_OUT,), minval=-bound, maxval=bound,
                              dtype=jnp.float32)

    # Small tiles so the demo exercises the 2x2 grid (both row blocks for the
    # "parallel" axis and the k-accumulation init/accumulate/finalize path).
    out = gcn_atp_conv(adj, x, weight, bias, R, bm=128, bk=128)
    out = jax.block_until_ready(out)

    ref = reference(adj, x, weight, bias, R)
    assert out.shape == (N, F_OUT)
    # bf16 MXU operands with f32 accumulation -> relative error ~1e-2.
    assert jnp.allclose(out, ref, atol=5e-2, rtol=5e-2), "mismatch vs reference"

    print("KERNEL_OK")
</pallas_src>

<mosaic_0001>
module attributes {stable_mosaic.version = 11 : i64} {
  func.func @gcn_atp_kernel(%arg0: i32, %arg1: i32, %arg2: memref<128x128xi8, #tpu.memory_space<vmem>>, %arg3: memref<128x128xbf16, #tpu.memory_space<vmem>>, %arg4: memref<128x1xf32, #tpu.memory_space<vmem>>, %arg5: memref<128x128xbf16, #tpu.memory_space<vmem>>, %arg6: memref<1x128xf32, #tpu.memory_space<vmem>>, %arg7: memref<128x128xf32, #tpu.memory_space<vmem>>, %arg8: memref<128x128xf32, #tpu.memory_space<vmem>>) attributes {dimension_semantics = [#tpu.dimension_semantics<parallel>, #tpu.dimension_semantics<arbitrary>], iteration_bounds = array<i64: 2, 2>, scalar_prefetch = 0 : i64, scratch_operands = 1 : i64, tpu.core_type = #tpu.core_type<tc>, window_params = [{transform_indices = @transform_0, window_bounds = array<i64: 128, 128>}, {transform_indices = @transform_1, window_bounds = array<i64: 128, 128>}, {transform_indices = @transform_2, window_bounds = array<i64: 128, 1>}, {pipeline_mode = #tpu.pipeline_mode<synchronous>, transform_indices = @transform_3, window_bounds = array<i64: 128, 128>}, {pipeline_mode = #tpu.pipeline_mode<synchronous>, transform_indices = @transform_4, window_bounds = array<i64: 1, 128>}, {transform_indices = @transform_5, window_bounds = array<i64: 128, 128>}]} {
    %c0_i32 = arith.constant 0 : i32
    %0 = arith.cmpi eq, %arg1, %c0_i32 : i32
    %1 = arith.extui %0 : i1 to i32
    %c0_i32_0 = arith.constant 0 : i32
    %2 = arith.cmpi ne, %1, %c0_i32_0 : i32
    scf.if %2 {
      %cst_9 = arith.constant 0.000000e+00 : f32
      %13 = vector.broadcast %cst_9 : f32 to vector<128x128xf32>
      %c0_10 = arith.constant 0 : index
      %c0_11 = arith.constant 0 : index
      %14 = vector.load %arg8[%c0_10, %c0_11] : memref<128x128xf32, #tpu.memory_space<vmem>>, vector<128x128xf32>
      tpu.vector_store %arg8[%c0_10, %c0_11], %13 {strides = array<i32>} : memref<128x128xf32, #tpu.memory_space<vmem>>, vector<128x128xf32>,
    } else {
    }
    %c0 = arith.constant 0 : index
    %c0_1 = arith.constant 0 : index
    %3 = vector.load %arg8[%c0, %c0_1] : memref<128x128xf32, #tpu.memory_space<vmem>>, vector<128x128xf32>
    %c0_2 = arith.constant 0 : index
    %c0_3 = arith.constant 0 : index
    %4 = vector.load %arg2[%c0_2, %c0_3] : memref<128x128xi8, #tpu.memory_space<vmem>>, vector<128x128xi8>
    %5 = arith.sitofp %4 : vector<128x128xi8> to vector<128x128xbf16>
    %c0_4 = arith.constant 0 : index
    %c0_5 = arith.constant 0 : index
    %6 = vector.load %arg3[%c0_4, %c0_5] : memref<128x128xbf16, #tpu.memory_space<vmem>>, vector<128x128xbf16>
    %cst = arith.constant dense<0.000000e+00> : vector<128x128xf32>
    %7 = tpu.matmul %5, %6, %cst {dimension_numbers = #tpu.dot_dimension_numbers<[1], [0], [0], [1], [0, 0, 1, 1], [], []>} : vector<128x128xbf16>, vector<128x128xbf16>, vector<128x128xf32> -> vector<128x128xf32>
    %8 = arith.addf %3, %7 : vector<128x128xf32>
    %c0_6 = arith.constant 0 : index
    %c0_7 = arith.constant 0 : index
    %9 = vector.load %arg8[%c0_6, %c0_7] : memref<128x128xf32, #tpu.memory_space<vmem>>, vector<128x128xf32>
    tpu.vector_store %arg8[%c0_6, %c0_7], %8 {strides = array<i32>} : memref<128x128xf32, #tpu.memory_space<vmem>>, vector<128x128xf32>,
    %c1_i32 = arith.constant 1 : i32
    %10 = arith.cmpi eq, %arg1, %c1_i32 : i32
    %11 = arith.extui %10 : i1 to i32
    %c0_i32_8 = arith.constant 0 : i32
    %12 = arith.cmpi ne, %11, %c0_i32_8 : i32
    scf.if %12 {
      %c0_9 = arith.constant 0 : index
      %c0_10 = arith.constant 0 : index
      %13 = vector.load %arg4[%c0_9, %c0_10] : memref<128x1xf32, #tpu.memory_space<vmem>>, vector<128x1xf32>
      %c0_11 = arith.constant 0 : index
      %c0_12 = arith.constant 0 : index
      %14 = vector.load %arg8[%c0_11, %c0_12] : memref<128x128xf32, #tpu.memory_space<vmem>>, vector<128x128xf32>
      %15 = vector.broadcast %13 : vector<128x1xf32> to vector<128x128xf32>
      %16 = arith.mulf %15, %14 : vector<128x128xf32>
      %17 = arith.truncf %16 : vector<128x128xf32> to vector<128x128xbf16>
      %c0_13 = arith.constant 0 : index
      %c0_14 = arith.constant 0 : index
      %18 = vector.load %arg5[%c0_13, %c0_14] : memref<128x128xbf16, #tpu.memory_space<vmem>>, vector<128x128xbf16>
      %cst_15 = arith.constant dense<0.000000e+00> : vector<128x128xf32>
      %19 = tpu.matmul %17, %18, %cst_15 {dimension_numbers = #tpu.dot_dimension_numbers<[1], [0], [0], [1], [0, 0, 1, 1], [], []>} : vector<128x128xbf16>, vector<128x128xbf16>, vector<128x128xf32> -> vector<128x128xf32>
      %c0_16 = arith.constant 0 : index
      %c0_17 = arith.constant 0 : index
      %20 = vector.load %arg6[%c0_16, %c0_17] : memref<1x128xf32, #tpu.memory_space<vmem>>, vector<1x128xf32>
      %21 = vector.broadcast %20 : vector<1x128xf32> to vector<128x128xf32>
      %22 = arith.addf %19, %21 : vector<128x128xf32>
      %c0_18 = arith.constant 0 : index
      %c0_19 = arith.constant 0 : index
      %23 = vector.load %arg7[%c0_18, %c0_19] : memref<128x128xf32, #tpu.memory_space<vmem>>, vector<128x128xf32>
      tpu.vector_store %arg7[%c0_18, %c0_19], %22 {strides = array<i32>} : memref<128x128xf32, #tpu.memory_space<vmem>>, vector<128x128xf32>,
    } else {
    }
    return
  }
  func.func @transform_0(%arg0: i32, %arg1: i32) -> (i32, i32) {
    %c0_i32 = arith.constant 0 : i32
    return %arg0, %arg1 : i32, i32
  }
  func.func @transform_1(%arg0: i32, %arg1: i32) -> (i32, i32) {
    %c0_i32 = arith.constant 0 : i32
    %c0_i32_0 = arith.constant 0 : i32
    return %arg1, %c0_i32 : i32, i32
  }
  func.func @transform_2(%arg0: i32, %arg1: i32) -> (i32, i32) {
    %c0_i32 = arith.constant 0 : i32
    %c0_i32_0 = arith.constant 0 : i32
    return %arg0, %c0_i32 : i32, i32
  }
  func.func @transform_3(%arg0: i32, %arg1: i32) -> (i32, i32) {
    %c0_i32 = arith.constant 0 : i32
    %c0_i32_0 = arith.constant 0 : i32
    %c0_i32_1 = arith.constant 0 : i32
    return %c0_i32, %c0_i32_0 : i32, i32
  }
  func.func @transform_4(%arg0: i32, %arg1: i32) -> (i32, i32) {
    %c0_i32 = arith.constant 0 : i32
    %c0_i32_0 = arith.constant 0 : i32
    %c0_i32_1 = arith.constant 0 : i32
    return %c0_i32, %c0_i32_0 : i32, i32
  }
  func.func @transform_5(%arg0: i32, %arg1: i32) -> (i32, i32) {
    %c0_i32 = arith.constant 0 : i32
    %c0_i32_0 = arith.constant 0 : i32
    return %arg0, %c0_i32 : i32, i32
  }
}

module attributes {stable_mosaic.version = 11 : i64} {
  func.func @gcn_atp_kernel(%arg0: i32, %arg1: i32, %arg2: memref<128x128xi8, #tpu.memory_space<vmem>>, %arg3: memref<128x128xbf16, #tpu.memory_space<vmem>>, %arg4: memref<128x1xf32, #tpu.memory_space<vmem>>, %arg5: memref<128x128xbf16, #tpu.memory_space<vmem>>, %arg6: memref<1x128xf32, #tpu.memory_space<vmem>>, %arg7: memref<128x128xf32, #tpu.memory_space<vmem>>, %arg8: memref<128x128xf32, #tpu.memory_space<vmem>>) attributes {dimension_semantics = [#tpu.dimension_semantics<parallel>, #tpu.dimension_semantics<arbitrary>], iteration_bounds = array<i64: 2, 2>, scalar_prefetch = 0 : i64, scratch_operands = 1 : i64, tpu.core_type = #tpu.core_type<tc>, window_params = [{transform_indices = @transform_0, window_bounds = array<i64: 128, 128>}, {transform_indices = @transform_1, window_bounds = array<i64: 128, 128>}, {transform_indices = @transform_2, window_bounds = array<i64: 128, 1>}, {pipeline_mode = #tpu.pipeline_mode<synchronous>, transform_indices = @transform_3, window_bounds = array<i64: 128, 128>}, {pipeline_mode = #tpu.pipeline_mode<synchronous>, transform_indices = @transform_4, window_bounds = array<i64: 1, 128>}, {transform_indices = @transform_5, window_bounds = array<i64: 128, 128>}]} {
    %c0_i32 = arith.constant 0 : i32
    %0 = arith.cmpi eq, %arg1, %c0_i32 : i32
    %1 = arith.extui %0 : i1 to i32
    %c0_i32_0 = arith.constant 0 : i32
    %2 = arith.cmpi ne, %1, %c0_i32_0 : i32
    scf.if %2 {
      %cst_9 = arith.constant 0.000000e+00 : f32
      %13 = vector.broadcast %cst_9 : f32 to vector<128x128xf32>
      %c0_10 = arith.constant 0 : index
      %c0_11 = arith.constant 0 : index
      %14 = vector.load %arg8[%c0_10, %c0_11] : memref<128x128xf32, #tpu.memory_space<vmem>>, vector<128x128xf32>
      tpu.vector_store %arg8[%c0_10, %c0_11], %13 {strides = array<i32>} : memref<128x128xf32, #tpu.memory_space<vmem>>, vector<128x128xf32>,
    } else {
    }
    %c0 = arith.constant 0 : index
    %c0_1 = arith.constant 0 : index
    %3 = vector.load %arg8[%c0, %c0_1] : memref<128x128xf32, #tpu.memory_space<vmem>>, vector<128x128xf32>
    %c0_2 = arith.constant 0 : index
    %c0_3 = arith.constant 0 : index
    %4 = vector.load %arg2[%c0_2, %c0_3] : memref<128x128xi8, #tpu.memory_space<vmem>>, vector<128x128xi8>
    %5 = arith.sitofp %4 : vector<128x128xi8> to vector<128x128xbf16>
    %c0_4 = arith.constant 0 : index
    %c0_5 = arith.constant 0 : index
    %6 = vector.load %arg3[%c0_4, %c0_5] : memref<128x128xbf16, #tpu.memory_space<vmem>>, vector<128x128xbf16>
    %cst = arith.constant dense<0.000000e+00> : vector<128x128xf32>
    %7 = tpu.matmul %5, %6, %cst {dimension_numbers = #tpu.dot_dimension_numbers<[1], [0], [0], [1], [0, 0, 1, 1], [], []>} : vector<128x128xbf16>, vector<128x128xbf16>, vector<128x128xf32> -> vector<128x128xf32>
    %8 = arith.addf %3, %7 : vector<128x128xf32>
    %c0_6 = arith.constant 0 : index
    %c0_7 = arith.constant 0 : index
    %9 = vector.load %arg8[%c0_6, %c0_7] : memref<128x128xf32, #tpu.memory_space<vmem>>, vector<128x128xf32>
    tpu.vector_store %arg8[%c0_6, %c0_7], %8 {strides = array<i32>} : memref<128x128xf32, #tpu.memory_space<vmem>>, vector<128x128xf32>,
    %c1_i32 = arith.constant 1 : i32
    %10 = arith.cmpi eq, %arg1, %c1_i32 : i32
    %11 = arith.extui %10 : i1 to i32
    %c0_i32_8 = arith.constant 0 : i32
    %12 = arith.cmpi ne, %11, %c0_i32_8 : i32
    scf.if %12 {
      %c0_9 = arith.constant 0 : index
      %c0_10 = arith.constant 0 : index
      %13 = vector.load %arg4[%c0_9, %c0_10] : memref<128x1xf32, #tpu.memory_space<vmem>>, vector<128x1xf32>
      %c0_11 = arith.constant 0 : index
      %c0_12 = arith.constant 0 : index
      %14 = vector.load %arg8[%c0_11, %c0_12] : memref<128x128xf32, #tpu.memory_space<vmem>>, vector<128x128xf32>
      %15 = vector.broadcast %13 : vector<128x1xf32> to vector<128x128xf32>
      %16 = arith.mulf %15, %14 : vector<128x128xf32>
      %17 = arith.truncf %16 : vector<128x128xf32> to vector<128x128xbf16>
      %c0_13 = arith.constant 0 : index
      %c0_14 = arith.constant 0 : index
      %18 = vector.load %arg5[%c0_13, %c0_14] : memref<128x128xbf16, #tpu.memory_space<vmem>>, vector<128x128xbf16>
      %cst_15 = arith.constant dense<0.000000e+00> : vector<128x128xf32>
      %19 = tpu.matmul %17, %18, %cst_15 {dimension_numbers = #tpu.dot_dimension_numbers<[1], [0], [0], [1], [0, 0, 1, 1], [], []>} : vector<128x128xbf16>, vector<128x128xbf16>, vector<128x128xf32> -> vector<128x128xf32>
      %c0_16 = arith.constant 0 : index
      %c0_17 = arith.constant 0 : index
      %20 = vector.load %arg6[%c0_16, %c0_17] : memref<1x128xf32, #tpu.memory_space<vmem>>, vector<1x128xf32>
      %21 = vector.broadcast %20 : vector<1x128xf32> to vector<128x128xf32>
      %22 = arith.addf %19, %21 : vector<128x128xf32>
      %c0_18 = arith.constant 0 : index
      %c0_19 = arith.constant 0 : index
      %23 = vector.load %arg7[%c0_18, %c0_19] : memref<128x128xf32, #tpu.memory_space<vmem>>, vector<128x128xf32>
      tpu.vector_store %arg7[%c0_18, %c0_19], %22 {strides = array<i32>} : memref<128x128xf32, #tpu.memory_space<vmem>>, vector<128x128xf32>,
    } else {
    }
    return
  }
  func.func @transform_0(%arg0: i32, %arg1: i32) -> (i32, i32) {
    %c0_i32 = arith.constant 0 : i32
    return %arg0, %arg1 : i32, i32
  }
  func.func @transform_1(%arg0: i32, %arg1: i32) -> (i32, i32) {
    %c0_i32 = arith.constant 0 : i32
    %c0_i32_0 = arith.constant 0 : i32
    return %arg1, %c0_i32 : i32, i32
  }
  func.func @transform_2(%arg0: i32, %arg1: i32) -> (i32, i32) {
    %c0_i32 = arith.constant 0 : i32
    %c0_i32_0 = arith.constant 0 : i32
    return %arg0, %c0_i32 : i32, i32
  }
  func.func @transform_3(%arg0: i32, %arg1: i32) -> (i32, i32) {
    %c0_i32 = arith.constant 0 : i32
    %c0_i32_0 = arith.constant 0 : i32
    %c0_i32_1 = arith.constant 0 : i32
    return %c0_i32, %c0_i32_0 : i32, i32
  }
  func.func @transform_4(%arg0: i32, %arg1: i32) -> (i32, i32) {
    %c0_i32 = arith.constant 0 : i32
    %c0_i32_0 = arith.constant 0 : i32
    %c0_i32_1 = arith.constant 0 : i32
    return %c0_i32, %c0_i32_0 : i32, i32
  }
  func.func @transform_5(%arg0: i32, %arg1: i32) -> (i32, i32) {
    %c0_i32 = arith.constant 0 : i32
    %c0_i32_0 = arith.constant 0 : i32
    return %arg0, %c0_i32 : i32, i32
  }
}

</mosaic_0001>

<llo_original>
// kernel: _gcn_atp_conv_impl.1
$region0: #{_gcn_atp_conv_impl.1}
  #allocation0 [shape = 'u32[]', space=smem, size = 0x4, offset = 0x4, fixed_abs, tag = 'smem constant byte address 0x4 - core index']
  #allocation1 [shape = 'u32[144,128]{1,0:T(1,128)}', space=vmem, size = 0x12000, scoped, tag = 'internal scratch']
  #allocation2 [shape = 'f32[128,128]{1,0:T(8,128)}', space=vmem, size = 0x10000, scoped, tag = 'scratch operand']
  %s0 = inlined_call_operand.vmem [shape: s8[256,256], index: 0, kind: input, shape index: {}]
  %s1 = inlined_call_operand.vmem [shape: bf16[256,128], index: 1, kind: input, shape index: {}]
  %s2 = inlined_call_operand.vmem [shape: f32[256,1], index: 2, kind: input, shape index: {}]
  %s3 = inlined_call_operand.vmem [shape: bf16[128,128], index: 3, kind: input, shape index: {}]
  %s4 = inlined_call_operand.vmem [shape: f32[1,128], index: 4, kind: input, shape index: {}]
  %s5 = inlined_call_operand.vmem [shape: f32[256,128], index: 5, kind: output, shape index: {}]
  %s6 = sld [smem:[#allocation0]]
  $region99: #{_gcn_atp_conv_impl.1} parent=0
    _
  %s8 = ssub.s32 1, %s6
  %s9 = scalar_select 0, %s8, %s6
  $region1: #{_gcn_atp_conv_impl.1} parent=0
    #allocation3 [shape = 'u8[32768]{0}', space=vmem, size = 0x8000, scoped, tag = 'input window, operand 0']
    loop: start=0, step=1, limit=6
    $region2: #{_gcn_atp_conv_impl.1} parent=1 // loop_pre_header
      _
    $region3: #{_gcn_atp_conv_impl.1} parent=1 // loop_header
      %s11 = sphi 0, %s15
      %p12 = scmp.ge.s32.totalorder %s11, 6
      %s18 = sphi 0, %s30
      %s19 = sphi 0, %s26
      %s20 = sphi 0, %s18
      %s21 = sphi 0, %s19
      %s22 = sphi 0, %s20
      %s23 = sphi 0, %s21
      %s35 = sphi 0, %s37
      %s38 = sphi 0, %s35
      %s39 = sphi 0, %s38
      %s55 = sphi 0, %s39
      %s61 = sphi 0, %s63
      %s64 = sphi 0, %s61
      %s65 = sphi 0, %s64
      %s81 = sphi 0, %s65
      %s87 = sphi 0, %s89
      %s90 = sphi 0, %s87
      %s91 = sphi 0, %s90
      %s107 = sphi 0, %s91
      %s111 = sphi 0, %s111
      %s113 = sphi 0, %s111
      %s114 = sphi 0, %s113
      %s128 = sphi 0, %s114
      %s132 = sphi 0, %s132
      %s134 = sphi 0, %s132
      %s135 = sphi 0, %s134
      %s149 = sphi 0, %s135
      %s155 = sphi 0, %s157
      %s158 = sphi 0, %s155
      %s159 = sphi 0, %s158
      %s175 = sphi 0, %s159
    $region4: #{_gcn_atp_conv_impl.1} parent=1 // loop_header_branch
      %14 = sbr.rel (%p12) target = $region8
    $region5: #{_gcn_atp_conv_impl.1} parent=1 // loop_body
      %s16 = ssub.s32 %s11, 1
      %s17 = ssub.s32 %s11, 2
      %s24 = sadd.s32 1, %s19
      %p25 = scmp.ge.s32.totalorder %s24, 2
      %s26 = scalar_select %p25, 0, %s24
      %s27 = sadd.s32 1, %s18
      %s28 = scalar_select %p25, %s27, %s18
      %p29 = scmp.ge.s32.totalorder %s28, 2
      %s30 = scalar_select %p29, 0, %s28
      %s31 = ssub.s32 %s18, %s30
      %s32 = ssub.s32 %s19, %s26
      %s33 = sor.u32 %s31, %s32
      %p34 = scmp.eq.s32.totalorder %s33, 0
      %s36 = sadd.s32 %s35, 1
      %s37 = scalar_select %p34, %s35, %s36
      %p40 = pneg %p34
      %p41 = scmp.eq.s32.totalorder %s11, 3
      %p42 = por %p40, %p41
      %p43 = scmp.ne.s32.totalorder %s35, %s38
      %p44 = scmp.eq.s32.totalorder %s11, 0
      %p45 = por %p43, %p44
      %p46 = scmp.ne.s32.totalorder %s35, %s38
      %p47 = scmp.eq.s32.totalorder %s16, 3
      %p48 = por %p46, %p47
      %p49 = scmp.ne.s32.totalorder %s38, %s39
      %p50 = scmp.eq.s32.totalorder %s16, 0
      %p51 = por %p49, %p50
      %p52 = scmp.ne.s32.totalorder %s38, %s39
      %p53 = scmp.eq.s32.totalorder %s17, 3
      %p54 = por %p52, %p53
      %p56 = scmp.ne.s32.totalorder %s39, %s55
      %p57 = scmp.eq.s32.totalorder %s17, 0
      %p58 = por %p56, %p57
      %s59 = ssub.s32 %s19, %s26
      %p60 = scmp.eq.s32.totalorder %s59, 0
      %s62 = sadd.s32 %s61, 1
      %s63 = scalar_select %p60, %s61, %s62
      %p66 = pneg %p60
      %p67 = scmp.eq.s32.totalorder %s11, 3
      %p68 = por %p66, %p67
      %p69 = scmp.ne.s32.totalorder %s61, %s64
      %p70 = scmp.eq.s32.totalorder %s11, 0
      %p71 = por %p69, %p70
      %p72 = scmp.ne.s32.totalorder %s61, %s64
      %p73 = scmp.eq.s32.totalorder %s16, 3
      %p74 = por %p72, %p73
      %p75 = scmp.ne.s32.totalorder %s64, %s65
      %p76 = scmp.eq.s32.totalorder %s16, 0
      %p77 = por %p75, %p76
      %p78 = scmp.ne.s32.totalorder %s64, %s65
      %p79 = scmp.eq.s32.totalorder %s17, 3
      %p80 = por %p78, %p79
      %p82 = scmp.ne.s32.totalorder %s65, %s81
      %p83 = scmp.eq.s32.totalorder %s17, 0
      %p84 = por %p82, %p83
      %s85 = ssub.s32 %s18, %s30
      %p86 = scmp.eq.s32.totalorder %s85, 0
      %s88 = sadd.s32 %s87, 1
      %s89 = scalar_select %p86, %s87, %s88
      %p92 = pneg %p86
      %p93 = scmp.eq.s32.totalorder %s11, 3
      %p94 = por %p92, %p93
      %p95 = scmp.ne.s32.totalorder %s87, %s90
      %p96 = scmp.eq.s32.totalorder %s11, 0
      %p97 = por %p95, %p96
      %p98 = scmp.ne.s32.totalorder %s87, %s90
      %p99 = scmp.eq.s32.totalorder %s16, 3
      %p100 = por %p98, %p99
      %p101 = scmp.ne.s32.totalorder %s90, %s91
      %p102 = scmp.eq.s32.totalorder %s16, 0
      %p103 = por %p101, %p102
      %p104 = scmp.ne.s32.totalorder %s90, %s91
      %p105 = scmp.eq.s32.totalorder %s17, 3
      %p106 = por %p104, %p105
      %p108 = scmp.ne.s32.totalorder %s91, %s107
      %p109 = scmp.eq.s32.totalorder %s17, 0
      %p110 = por %p108, %p109
      %s112 = sadd.s32 %s111, 1
      %p115 = scmp.eq.s32.totalorder %s11, 3
      %p116 = scmp.ne.s32.totalorder %s111, %s113
      %p117 = scmp.eq.s32.totalorder %s11, 0
      %p118 = por %p116, %p117
      %p119 = scmp.ne.s32.totalorder %s111, %s113
      %p120 = scmp.eq.s32.totalorder %s16, 3
      %p121 = por %p119, %p120
      %p122 = scmp.ne.s32.totalorder %s113, %s114
      %p123 = scmp.eq.s32.totalorder %s16, 0
      %p124 = por %p122, %p123
      %p125 = scmp.ne.s32.totalorder %s113, %s114
      %p126 = scmp.eq.s32.totalorder %s17, 3
      %p127 = por %p125, %p126
      %p129 = scmp.ne.s32.totalorder %s114, %s128
      %p130 = scmp.eq.s32.totalorder %s17, 0
      %p131 = por %p129, %p130
      %s133 = sadd.s32 %s132, 1
      %p136 = scmp.eq.s32.totalorder %s11, 3
      %p137 = scmp.ne.s32.totalorder %s132, %s134
      %p138 = scmp.eq.s32.totalorder %s11, 0
      %p139 = por %p137, %p138
      %p140 = scmp.ne.s32.totalorder %s132, %s134
      %p141 = scmp.eq.s32.totalorder %s16, 3
      %p142 = por %p140, %p141
      %p143 = scmp.ne.s32.totalorder %s134, %s135
      %p144 = scmp.eq.s32.totalorder %s16, 0
      %p145 = por %p143, %p144
      %p146 = scmp.ne.s32.totalorder %s134, %s135
      %p147 = scmp.eq.s32.totalorder %s17, 3
      %p148 = por %p146, %p147
      %p150 = scmp.ne.s32.totalorder %s135, %s149
      %p151 = scmp.eq.s32.totalorder %s17, 0
      %p152 = por %p150, %p151
      %s153 = ssub.s32 %s18, %s30
      %p154 = scmp.eq.s32.totalorder %s153, 0
      %s156 = sadd.s32 %s155, 1
      %s157 = scalar_select %p154, %s155, %s156
      %p160 = pneg %p154
      %p161 = scmp.eq.s32.totalorder %s11, 3
      %p162 = por %p160, %p161
      %p163 = scmp.ne.s32.totalorder %s155, %s158
      %p164 = scmp.eq.s32.totalorder %s11, 0
      %p165 = por %p163, %p164
      %p166 = scmp.ne.s32.totalorder %s155, %s158
      %p167 = scmp.eq.s32.totalorder %s16, 3
      %p168 = por %p166, %p167
      %p169 = scmp.ne.s32.totalorder %s158, %s159
      %p170 = scmp.eq.s32.totalorder %s16, 0
      %p171 = por %p169, %p170
      %p172 = scmp.ne.s32.totalorder %s158, %s159
      %p173 = scmp.eq.s32.totalorder %s17, 3
      %p174 = por %p172, %p173
      %p176 = scmp.ne.s32.totalorder %s159, %s175
      %p177 = scmp.eq.s32.totalorder %s17, 0
      %p178 = por %p176, %p177
      %p179 = scmp.le.s32.totalorder 1, %s11
      %p180 = scmp.lt.s32.totalorder %s11, 5
      %p181 = pnand %p179, %p180
      %p182 = pneg %p181
      // Predicated region
      $region9: #{_gcn_atp_conv_impl.1} parent=5 // pred_check
        _
      $region10: #{_gcn_atp_conv_impl.1} parent=5 // pred_check_branch
        %184 = sbr.rel (%p181) target = $region12
      $region11: #{_gcn_atp_conv_impl.1} parent=5 // pred_region
        %s185 = ssub.s32 %s11, 1
        // Predicated region
        $region13: #{_gcn_atp_conv_impl.1} parent=11 // pred_check
          %p186 = pneg %p124
        $region14: #{_gcn_atp_conv_impl.1} parent=11 // pred_check_branch
          %188 = sbr.rel (%p186) target = $region16
        $region15: #{_gcn_atp_conv_impl.1} parent=11 // pred_region
          _
        $region16: #{_gcn_atp_conv_impl.1} parent=11 // pred_fallthru
          _
        // Predicated region
        $region17: #{_gcn_atp_conv_impl.1} parent=11 // pred_check
          %p189 = pneg %p145
        $region18: #{_gcn_atp_conv_impl.1} parent=11 // pred_check_branch
          %191 = sbr.rel (%p189) target = $region20
        $region19: #{_gcn_atp_conv_impl.1} parent=11 // pred_region
          _
        $region20: #{_gcn_atp_conv_impl.1} parent=11 // pred_fallthru
          _
      $region12: #{_gcn_atp_conv_impl.1} parent=5 // pred_fallthru
        _
      %p192 = scmp.lt.s32.totalorder %s11, 4
      // Predicated region
      $region21: #{_gcn_atp_conv_impl.1} parent=5 // pred_check
        %p193 = pneg %p192
      $region22: #{_gcn_atp_conv_impl.1} parent=5 // pred_check_branch
        %195 = sbr.rel (%p193) target = $region24
      $region23: #{_gcn_atp_conv_impl.1} parent=5 // pred_region
        // Predicated region
        $region25: #{_gcn_atp_conv_impl.1} parent=23 // pred_check
          %p196 = pneg %p45
        $region26: #{_gcn_atp_conv_impl.1} parent=23 // pred_check_branch
          %198 = sbr.rel (%p196) target = $region28
        $region27: #{_gcn_atp_conv_impl.1} parent=23 // pred_region
          %s199 = sand.u32 %s35, 1
          %s200 = sand.u32 %s35, 1
          %s201 = smul.addr %s200, 32
          %s202 = scalar_lea.vmem [#allocation3], %s201
          %s203 = smul.u32 4, %s18
          %s204 = smul.addr %s203, 2
          %s205 = sadd.s32 %s19, %s204
          %s206 = smul.addr %s205, 8
          %s207 = scalar_lea.vmem %s0, %s206
          // Predicated region
          $region29: #{_gcn_atp_conv_impl.1} parent=27 // pred_check
            _
          $region30: #{_gcn_atp_conv_impl.1} parent=27 // pred_check_branch
            %209 = sbr.rel (0) target = $region32
          $region31: #{_gcn_atp_conv_impl.1} parent=27 // pred_region
            // Predicated region
            $region33: #{_gcn_atp_conv_impl.1} parent=31 // pred_check
              _
            $region34: #{_gcn_atp_conv_impl.1} parent=31 // pred_check_branch
              %211 = sbr.rel (0) target = $region36
            $region35: #{_gcn_atp_conv_impl.1} parent=31 // pred_region
              // Predicated region
              $region48: #{_gcn_atp_conv_impl.1} parent=35 // pred_check
                _
              $region49: #{_gcn_atp_conv_impl.1} parent=35 // pred_check_branch
                %232 = sbr.rel (0) target = $region51
              $region50: #{_gcn_atp_conv_impl.1} parent=35 // pred_region
                loop: start=0, step=1, limit=1
                $region52: #{_gcn_atp_conv_impl.1} parent=50 // loop_pre_header
                  _
                $region53: #{_gcn_atp_conv_impl.1} parent=50 // loop_header
                  %s234 = sphi 0, %s238
                  %p235 = scmp.ge.s32.totalorder %s234, 1
                  %s239 = sphi %s207, %s207
                  %s240 = sphi %s202, %s202
                $region54: #{_gcn_atp_conv_impl.1} parent=50 // loop_header_branch
                  %237 = sbr.rel (%p235) target = $region58
                $region55: #{_gcn_atp_conv_impl.1} parent=50 // loop_body
                  %v241 = vld [vmem:[%s239] sm:$0xff]
                  %242 = vst [vmem:[%s240] sm:$0xff] %v241
                  %v243 = vld [vmem:[%s239 + $0x10] sm:$0xff]
                  %244 = vst [vmem:[%s240 + $0x8] sm:$0xff] %v243
                  %v245 = vld [vmem:[%s239 + $0x20] sm:$0xff]
                  %246 = vst [vmem:[%s240 + $0x10] sm:$0xff] %v245
                  %v247 = vld [vmem:[%s239 + $0x30] sm:$0xff]
                  %248 = vst [vmem:[%s240 + $0x18] sm:$0xff] %v247
                $region56: #{_gcn_atp_conv_impl.1} parent=50 // loop_footer
                  %s238 = sadd.s32 1, %s234
                $region57: #{_gcn_atp_conv_impl.1} parent=50 // loop_footer_branch
                  %233 = sbr.rel target = $region53
                $region58: #{_gcn_atp_conv_impl.1} parent=50 // loop_exit
                  _
              $region51: #{_gcn_atp_conv_impl.1} parent=35 // pred_fallthru
                _
              // Predicated region
              $region59: #{_gcn_atp_conv_impl.1} parent=35 // pred_check
                _
              $region60: #{_gcn_atp_conv_impl.1} parent=35 // pred_check_branch
                %250 = sbr.rel target = $region62
              $region61: #{_gcn_atp_conv_impl.1} parent=35 // pred_region
                _
              $region62: #{_gcn_atp_conv_impl.1} parent=35 // pred_fallthru
                _
            $region36: #{_gcn_atp_conv_impl.1} parent=31 // pred_fallthru
              _
            // Predicated region
            $region37: #{_gcn_atp_conv_impl.1} parent=31 // pred_check
              _
            $region38: #{_gcn_atp_conv_impl.1} parent=31 // pred_check_branch
              %213 = sbr.rel target = $region40
            $region39: #{_gcn_atp_conv_impl.1} parent=31 // pred_region
              loop: start=0, step=1, limit=1
              $region41: #{_gcn_atp_conv_impl.1} parent=39 // loop_pre_header
                _
              $region42: #{_gcn_atp_conv_impl.1} parent=39 // loop_header
                %s216 = sphi 0, %s220
                %p217 = scmp.ge.s32.totalorder %s216, 1
                %s221 = sphi %s207, %s207
                %s222 = sphi %s202, %s202
              $region43: #{_gcn_atp_conv_impl.1} parent=39 // loop_header_branch
                %219 = sbr.rel (%p217) target = $region47
              $region44: #{_gcn_atp_conv_impl.1} parent=39 // loop_body
                %v223 = vld [vmem:[%s221] sm:$0xff]
                %224 = vst [vmem:[%s222] sm:$0xff] %v223
                %v225 = vld [vmem:[%s221 + $0x10] sm:$0xff]
                %226 = vst [vmem:[%s222 + $0x8] sm:$0xff] %v225
                %v227 = vld [vmem:[%s221 + $0x20] sm:$0xff]
                %228 = vst [vmem:[%s222 + $0x10] sm:$0xff] %v227
                %v229 = vld [vmem:[%s221 + $0x30] sm:$0xff]
                %230 = vst [vmem:[%s222 + $0x18] sm:$0xff] %v229
              $region45: #{_gcn_atp_conv_impl.1} parent=39 // loop_footer
                %s220 = sadd.s32 1, %s216
              $region46: #{_gcn_atp_conv_impl.1} parent=39 // loop_footer_branch
                %215 = sbr.rel target = $region42
              $region47: #{_gcn_atp_conv_impl.1} parent=39 // loop_exit
                _
            $region40: #{_gcn_atp_conv_impl.1} parent=31 // pred_fallthru
              _
          $region32: #{_gcn_atp_conv_impl.1} parent=27 // pred_fallthru
            _
          %251 = vnop
        $region28: #{_gcn_atp_conv_impl.1} parent=23 // pred_fallthru
          _
        // Predicated region
        $region63: #{_gcn_atp_conv_impl.1} parent=23 // pred_check
          %p252 = pneg %p71
        $region64: #{_gcn_atp_conv_impl.1} parent=23 // pred_check_branch
          %254 = sbr.rel (%p252) target = $region66
        $region65: #{_gcn_atp_conv_impl.1} parent=23 // pred_region
          %s255 = smul.u32 16, %s19
          %p256 = scmp.lt.s32.totalorder %s255, 31
          %s257 = scalar_select %p256, %s255, 31
          %s258 = smul.addr %s257, 4
          %s259 = scalar_lea.vmem %s1, %s258
          %s260 = smul.u32 16, %s19
        $region66: #{_gcn_atp_conv_impl.1} parent=23 // pred_fallthru
          _
        // Predicated region
        $region67: #{_gcn_atp_conv_impl.1} parent=23 // pred_check
          %p261 = pneg %p97
        $region68: #{_gcn_atp_conv_impl.1} parent=23 // pred_check_branch
          %263 = sbr.rel (%p261) target = $region70
        $region69: #{_gcn_atp_conv_impl.1} parent=23 // pred_region
          %s264 = smul.u32 16, %s18
          %p265 = scmp.lt.s32.totalorder %s264, 31
          %s266 = scalar_select %p265, %s264, 31
          %s267 = smul.addr %s266, 8
          %s268 = scalar_lea.vmem %s2, %s267
          %s269 = smul.u32 16, %s18
        $region70: #{_gcn_atp_conv_impl.1} parent=23 // pred_fallthru
          _
      $region24: #{_gcn_atp_conv_impl.1} parent=5 // pred_fallthru
        _
      %p270 = scmp.le.s32.totalorder 1, %s11
      %p271 = scmp.lt.s32.totalorder %s11, 5
      %p272 = pnand %p270, %p271
      %p273 = pneg %p272
      // Predicated region
      $region71: #{_gcn_atp_conv_impl.1} parent=5 // pred_check
        _
      $region72: #{_gcn_atp_conv_impl.1} parent=5 // pred_check_branch
        %275 = sbr.rel (%p272) target = $region74
      $region73: #{_gcn_atp_conv_impl.1} parent=5 // pred_region
        %s276 = ssub.s32 %s11, 1
        %s277 = sand.u32 %s38, 1
        %s278 = sand.u32 %s38, 1
        %s279 = smul.addr %s278, 32
        %s280 = scalar_lea.vmem [#allocation3], %s279
        // Predicated region
        $region75: #{_gcn_atp_conv_impl.1} parent=73 // pred_check
          %p281 = pneg %p51
        $region76: #{_gcn_atp_conv_impl.1} parent=73 // pred_check_branch
          %283 = sbr.rel (%p281) target = $region78
        $region77: #{_gcn_atp_conv_impl.1} parent=73 // pred_region
          _
        $region78: #{_gcn_atp_conv_impl.1} parent=73 // pred_fallthru
          _
        %s284 = sand.u32 %s38, 1
        %s285 = sand.u32 %s38, 1
        %s286 = smul.addr %s285, 32
        %s287 = scalar_lea.vmem [#allocation3], %s286
        %p288 = pneg %p51
        %p289 = pneg %p48
        %s290 = smul.u32 16, %s21
        %p291 = scmp.lt.s32.totalorder %s290, 31
        %s292 = scalar_select %p291, %s290, 31
        %s293 = smul.addr %s292, 4
        %s294 = scalar_lea.vmem %s1, %s293
        %p295 = pneg %p77
        %p296 = pneg %p74
        %s297 = smul.u32 16, %s20
        %p298 = scmp.lt.s32.totalorder %s297, 31
        %s299 = scalar_select %p298, %s297, 31
        %s300 = smul.addr %s299, 8
        %s301 = scalar_lea.vmem %s2, %s300
        %p302 = pneg %p103
        %p303 = pneg %p100
        %p304 = pneg %p124
        %p305 = pneg %p121
        %p306 = pneg %p145
        %p307 = pneg %p142
        %p308 = pneg %p171
        %p309 = pneg %p168
        %s310 = smul.u32 16, %s20
        %p311 = scmp.lt.s32.totalorder %s310, 31
        %s312 = scalar_select %p311, %s310, 31
        %s313 = smul.addr %s312, 8
        %s314 = scalar_lea.vmem %s5, %s313
        %s315 = smul.u32 4, %s20
        %s316 = smul.u32 16, %s21
        %p317 = scmp.lt.s32.totalorder %s316, 31
        %s318 = scalar_select %p317, %s316, 31
        %s319 = smul.addr %s318, 4
        %s320 = scalar_lea.vmem %s1, %s319
        %s321 = smul.u32 16, %s21
        %s322 = smul.u32 16, %s20
        %p323 = scmp.lt.s32.totalorder %s322, 31
        %s324 = scalar_select %p323, %s322, 31
        %s325 = smul.addr %s324, 8
        %s326 = scalar_lea.vmem %s2, %s325
        %s327 = smul.u32 16, %s20
        %s328 = smul.u32 16, %s20
        %p329 = scmp.lt.s32.totalorder %s328, 31
        %s330 = scalar_select %p329, %s328, 31
        %s331 = smul.addr %s330, 8
        %s332 = scalar_lea.vmem %s5, %s331
        %s333 = smul.u32 16, %s20
        %p335 = scmp.eq.s32.totalorder %s21, 0
        // Predicated region
        $region79: #{_gcn_atp_conv_impl.1} parent=73 // pred_check
          %p336 = pneg %p335
        $region80: #{_gcn_atp_conv_impl.1} parent=73 // pred_check_branch
          %338 = sbr.rel (%p336) target = $region82
        $region81: #{_gcn_atp_conv_impl.1} parent=73 // pred_region
          %339 = vst [vmem:[#allocation2] sm:$0xff] 0.0
          %340 = vst [vmem:[#allocation2 + $0x8] sm:$0xff] 0.0
          %341 = vst [vmem:[#allocation2 + $0x10] sm:$0xff] 0.0
          %342 = vst [vmem:[#allocation2 + $0x18] sm:$0xff] 0.0
          %343 = vst [vmem:[#allocation2 + $0x20] sm:$0xff] 0.0
          %344 = vst [vmem:[#allocation2 + $0x28] sm:$0xff] 0.0
          %345 = vst [vmem:[#allocation2 + $0x30] sm:$0xff] 0.0
          %346 = vst [vmem:[#allocation2 + $0x38] sm:$0xff] 0.0
          %347 = vst [vmem:[#allocation2 + $0x40] sm:$0xff] 0.0
          %348 = vst [vmem:[#allocation2 + $0x48] sm:$0xff] 0.0
          %349 = vst [vmem:[#allocation2 + $0x50] sm:$0xff] 0.0
          %350 = vst [vmem:[#allocation2 + $0x58] sm:$0xff] 0.0
          %351 = vst [vmem:[#allocation2 + $0x60] sm:$0xff] 0.0
          %352 = vst [vmem:[#allocation2 + $0x68] sm:$0xff] 0.0
          %353 = vst [vmem:[#allocation2 + $0x70] sm:$0xff] 0.0
          %354 = vst [vmem:[#allocation2 + $0x78] sm:$0xff] 0.0
        $region82: #{_gcn_atp_conv_impl.1} parent=73 // pred_fallthru
          _
        %v355 = vld [vmem:[#allocation2] sm:$0xff]
        %v356 = vld [vmem:[#allocation2 + $0x8] sm:$0xff]
        %v357 = vld [vmem:[#allocation2 + $0x10] sm:$0xff]
        %v358 = vld [vmem:[#allocation2 + $0x18] sm:$0xff]
        %v359 = vld [vmem:[#allocation2 + $0x20] sm:$0xff]
        %v360 = vld [vmem:[#allocation2 + $0x28] sm:$0xff]
        %v361 = vld [vmem:[#allocation2 + $0x30] sm:$0xff]
        %v362 = vld [vmem:[#allocation2 + $0x38] sm:$0xff]
        %v363 = vld [vmem:[#allocation2 + $0x40] sm:$0xff]
        %v364 = vld [vmem:[#allocation2 + $0x48] sm:$0xff]
        %v365 = vld [vmem:[#allocation2 + $0x50] sm:$0xff]
        %v366 = vld [vmem:[#allocation2 + $0x58] sm:$0xff]
        %v367 = vld [vmem:[#allocation2 + $0x60] sm:$0xff]
        %v368 = vld [vmem:[#allocation2 + $0x68] sm:$0xff]
        %v369 = vld [vmem:[#allocation2 + $0x70] sm:$0xff]
        %v370 = vld [vmem:[#allocation2 + $0x78] sm:$0xff]
        %v371 = vld [vmem:[%s280] sm:$0xff]
        %v372 = vld [vmem:[%s280 + $0x8] sm:$0xff]
        %v373 = vld [vmem:[%s280 + $0x10] sm:$0xff]
        %v374 = vld [vmem:[%s280 + $0x18] sm:$0xff]
        %v375 = vunpack.c.l.s8.bf16 %v371
        %v376 = vunpack.c.h.s8.bf16 %v371
        %v377 = vunpack.c.l.s8.bf16 %v372
        %v378 = vunpack.c.h.s8.bf16 %v372
        %v379 = vunpack.c.l.s8.bf16 %v373
        %v380 = vunpack.c.h.s8.bf16 %v373
        %v381 = vunpack.c.l.s8.bf16 %v374
        %v382 = vunpack.c.h.s8.bf16 %v374
        %v383 = vld [vmem:[%s320] sm:$0xf]
        %v384 = vld [vmem:[%s320 + $0x4] sm:$0xf]
        %v385 = vld [vmem:[%s320 + $0x8] sm:$0xf]
        %v386 = vld [vmem:[%s320 + $0xc] sm:$0xf]
        %v387 = vld [vmem:[%s320 + $0x10] sm:$0xf]
        %v388 = vld [vmem:[%s320 + $0x14] sm:$0xf]
        %v389 = vld [vmem:[%s320 + $0x18] sm:$0xf]
        %v390 = vld [vmem:[%s320 + $0x1c] sm:$0xf]
        %v391 = vld [vmem:[%s320 + $0x20] sm:$0xf]
        %v392 = vld [vmem:[%s320 + $0x24] sm:$0xf]
        %v393 = vld [vmem:[%s320 + $0x28] sm:$0xf]
        %v394 = vld [vmem:[%s320 + $0x2c] sm:$0xf]
        %v395 = vld [vmem:[%s320 + $0x30] sm:$0xf]
        %v396 = vld [vmem:[%s320 + $0x34] sm:$0xf]
        %v397 = vld [vmem:[%s320 + $0x38] sm:$0xf]
        %v398 = vld [vmem:[%s320 + $0x3c] sm:$0xf]
        %v415 = vunpack.c.l.b16 %v383
        %v416 = vunpack.c.l.b16 %v384
        %v417 = vunpack.c.l.b16 %v385
        %v418 = vunpack.c.l.b16 %v386
        %v419 = vunpack.c.l.b16 %v387
        %v420 = vunpack.c.l.b16 %v388
        %v421 = vunpack.c.l.b16 %v389
        %v422 = vunpack.c.l.b16 %v390
        %v423 = vunpack.c.l.b16 %v391
        %v424 = vunpack.c.l.b16 %v392
        %v425 = vunpack.c.l.b16 %v393
        %v426 = vunpack.c.l.b16 %v394
        %v427 = vunpack.c.l.b16 %v395
        %v428 = vunpack.c.l.b16 %v396
        %v429 = vunpack.c.l.b16 %v397
        %v430 = vunpack.c.l.b16 %v398
        %v431 = vpack.c.b16 %v416, %v415
        %v432 = vpack.c.b16 %v418, %v417
        %v433 = vpack.c.b16 %v420, %v419
        %v434 = vpack.c.b16 %v422, %v421
        %v435 = vpack.c.b16 %v424, %v423
        %v436 = vpack.c.b16 %v426, %v425
        %v437 = vpack.c.b16 %v428, %v427
        %v438 = vpack.c.b16 %v430, %v429
        %447 = vmatprep.subr.bf16.mxu0 0
        %448 = vmatpush1.bf16.msra.mxu0 %v431
        %449 = vmatprep.subr.bf16.mxu0 0
        %450 = vmatpush1.bf16.msra.mxu0 %v432
        %451 = vmatprep.subr.bf16.mxu0 0
        %452 = vmatpush1.bf16.msra.mxu0 %v433
        %453 = vmatprep.subr.bf16.mxu0 0
        %454 = vmatpush1.bf16.msra.mxu0 %v434
        %455 = vmatprep.subr.bf16.mxu0 0
        %456 = vmatpush1.bf16.msra.mxu0 %v435
        %457 = vmatprep.subr.bf16.mxu0 0
        %458 = vmatpush1.bf16.msra.mxu0 %v436
        %459 = vmatprep.subr.bf16.mxu0 0
        %460 = vmatpush1.bf16.msra.mxu0 %v437
        %461 = vmatprep.subr.bf16.mxu0 0
        %462 = vmatpush1.bf16.msra.mxu0 %v438
        %463 = vmatprep.subr.bf16.mxu0 0
        %464 = vmatpush1.bf16.msra.mxu0 0
        %465 = vmatprep.subr.bf16.mxu0 0
        %466 = vmatpush1.bf16.msra.mxu0 0
        %467 = vmatprep.subr.bf16.mxu0 0
        %468 = vmatpush1.bf16.msra.mxu0 0
        %469 = vmatprep.subr.bf16.mxu0 0
        %470 = vmatpush1.bf16.msra.mxu0 0
        %471 = vmatprep.subr.bf16.mxu0 0
        %472 = vmatpush1.bf16.msra.mxu0 0
        %473 = vmatprep.subr.bf16.mxu0 0
        %474 = vmatpush1.bf16.msra.mxu0 0
        %475 = vmatprep.subr.bf16.mxu0 0
        %476 = vmatpush1.bf16.msra.mxu0 0
        %477 = vmatprep.subr.bf16.mxu0 0
        %478 = vmatpush1.bf16.msra.mxu0 0
        %479 = vmatprep.mubr.bf16.mxu0 0
        %480 = vmatmul.mubr.bf16.gmra.mrb[0].mxu0 %v375
        %v481 = vpop.f32.mrb[0].mxu0
        %v482 = vadd.f32 0.0, %v481
        %v483 = vpop.f32.mrb[0].mxu0
        %v484 = vpop.f32.mrb[0].mxu0
        %v485 = vadd.f32 0.0, %v484
        %v486 = vpop.f32.mrb[0].mxu0
        %487 = vmatprep.mubr.bf16.mxu0 0
        %488 = vmatmul.mubr.bf16.gmra.mrb[0].mxu0 %v376
        %v489 = vpop.f32.mrb[0].mxu0
        %v490 = vadd.f32 0.0, %v489
        %v491 = vpop.f32.mrb[0].mxu0
        %v492 = vpop.f32.mrb[0].mxu0
        %v493 = vadd.f32 0.0, %v492
        %v494 = vpop.f32.mrb[0].mxu0
        %495 = vmatprep.mubr.bf16.mxu0 0
        %496 = vmatmul.mubr.bf16.gmra.mrb[0].mxu0 %v377
        %v497 = vpop.f32.mrb[0].mxu0
        %v498 = vadd.f32 0.0, %v497
        %v499 = vpop.f32.mrb[0].mxu0
        %v500 = vpop.f32.mrb[0].mxu0
        %v501 = vadd.f32 0.0, %v500
        %v502 = vpop.f32.mrb[0].mxu0
        %503 = vmatprep.mubr.bf16.mxu0 0
        %504 = vmatmul.mubr.bf16.gmra.mrb[0].mxu0 %v378
        %v505 = vpop.f32.mrb[0].mxu0
        %v506 = vadd.f32 0.0, %v505
        %v507 = vpop.f32.mrb[0].mxu0
        %v508 = vpop.f32.mrb[0].mxu0
        %v509 = vadd.f32 0.0, %v508
        %v510 = vpop.f32.mrb[0].mxu0
        %511 = vmatprep.mubr.bf16.mxu0 0
        %512 = vmatmul.mubr.bf16.gmra.mrb[0].mxu0 %v379
        %v513 = vpop.f32.mrb[0].mxu0
        %v514 = vadd.f32 0.0, %v513
        %v515 = vpop.f32.mrb[0].mxu0
        %v516 = vpop.f32.mrb[0].mxu0
        %v517 = vadd.f32 0.0, %v516
        %v518 = vpop.f32.mrb[0].mxu0
        %519 = vmatprep.mubr.bf16.mxu0 0
        %520 = vmatmul.mubr.bf16.gmra.mrb[0].mxu0 %v380
        %v521 = vpop.f32.mrb[0].mxu0
        %v522 = vadd.f32 0.0, %v521
        %v523 = vpop.f32.mrb[0].mxu0
        %v524 = vpop.f32.mrb[0].mxu0
        %v525 = vadd.f32 0.0, %v524
        %v526 = vpop.f32.mrb[0].mxu0
        %527 = vmatprep.mubr.bf16.mxu0 0
        %528 = vmatmul.mubr.bf16.gmra.mrb[0].mxu0 %v381
        %v529 = vpop.f32.mrb[0].mxu0
        %v530 = vadd.f32 0.0, %v529
        %v531 = vpop.f32.mrb[0].mxu0
        %v532 = vpop.f32.mrb[0].mxu0
        %v533 = vadd.f32 0.0, %v532
        %v534 = vpop.f32.mrb[0].mxu0
        %535 = vmatprep.mubr.bf16.mxu0 0
        %536 = vmatmul.mubr.bf16.gmra.mrb[0].mxu0 %v382
        %v537 = vpop.f32.mrb[0].mxu0
        %v538 = vadd.f32 0.0, %v537
        %v539 = vpop.f32.mrb[0].mxu0
        %v540 = vpop.f32.mrb[0].mxu0
        %v541 = vadd.f32 0.0, %v540
        %v542 = vpop.f32.mrb[0].mxu0
        %543 = vdwg.mxu0
        %v544 = vadd.f32 %v355, %v482
        %v545 = vadd.f32 %v356, %v485
        %v546 = vadd.f32 %v357, %v490
        %v547 = vadd.f32 %v358, %v493
        %v548 = vadd.f32 %v359, %v498
        %v549 = vadd.f32 %v360, %v501
        %v550 = vadd.f32 %v361, %v506
        %v551 = vadd.f32 %v362, %v509
        %v552 = vadd.f32 %v363, %v514
        %v553 = vadd.f32 %v364, %v517
        %v554 = vadd.f32 %v365, %v522
        %v555 = vadd.f32 %v366, %v525
        %v556 = vadd.f32 %v367, %v530
        %v557 = vadd.f32 %v368, %v533
        %v558 = vadd.f32 %v369, %v538
        %v559 = vadd.f32 %v370, %v541
        %560 = vst [vmem:[#allocation2] sm:$0xff] %v544
        %561 = vst [vmem:[#allocation2 + $0x8] sm:$0xff] %v545
        %562 = vst [vmem:[#allocation2 + $0x10] sm:$0xff] %v546
        %563 = vst [vmem:[#allocation2 + $0x18] sm:$0xff] %v547
        %564 = vst [vmem:[#allocation2 + $0x20] sm:$0xff] %v548
        %565 = vst [vmem:[#allocation2 + $0x28] sm:$0xff] %v549
        %566 = vst [vmem:[#allocation2 + $0x30] sm:$0xff] %v550
        %567 = vst [vmem:[#allocation2 + $0x38] sm:$0xff] %v551
        %568 = vst [vmem:[#allocation2 + $0x40] sm:$0xff] %v552
        %569 = vst [vmem:[#allocation2 + $0x48] sm:$0xff] %v553
        %570 = vst [vmem:[#allocation2 + $0x50] sm:$0xff] %v554
        %571 = vst [vmem:[#allocation2 + $0x58] sm:$0xff] %v555
        %572 = vst [vmem:[#allocation2 + $0x60] sm:$0xff] %v556
        %573 = vst [vmem:[#allocation2 + $0x68] sm:$0xff] %v557
        %574 = vst [vmem:[#allocation2 + $0x70] sm:$0xff] %v558
        %575 = vst [vmem:[#allocation2 + $0x78] sm:$0xff] %v559
        %p576 = scmp.eq.s32.totalorder %s21, 1
        // Predicated region
        $region83: #{_gcn_atp_conv_impl.1} parent=73 // pred_check
          %p577 = pneg %p576
        $region84: #{_gcn_atp_conv_impl.1} parent=73 // pred_check_branch
          %579 = sbr.rel (%p577) target = $region86
        $region85: #{_gcn_atp_conv_impl.1} parent=73 // pred_region
          %v580 = vld [vmem:[%s326] sm:$0xff]
          %v581 = vld [vmem:[%s326 + $0x8] sm:$0xff]
          %v582 = vld [vmem:[%s326 + $0x10] sm:$0xff]
          %v583 = vld [vmem:[%s326 + $0x18] sm:$0xff]
          %v584 = vld [vmem:[%s326 + $0x20] sm:$0xff]
          %v585 = vld [vmem:[%s326 + $0x28] sm:$0xff]
          %v586 = vld [vmem:[%s326 + $0x30] sm:$0xff]
          %v587 = vld [vmem:[%s326 + $0x38] sm:$0xff]
          %v588 = vld [vmem:[%s326 + $0x40] sm:$0xff]
          %v589 = vld [vmem:[%s326 + $0x48] sm:$0xff]
          %v590 = vld [vmem:[%s326 + $0x50] sm:$0xff]
          %v591 = vld [vmem:[%s326 + $0x58] sm:$0xff]
          %v592 = vld [vmem:[%s326 + $0x60] sm:$0xff]
          %v593 = vld [vmem:[%s326 + $0x68] sm:$0xff]
          %v594 = vld [vmem:[%s326 + $0x70] sm:$0xff]
          %v595 = vld [vmem:[%s326 + $0x78] sm:$0xff]
          %v596 = vld [vmem:[#allocation2] sm:$0xff]
          %v597 = vld [vmem:[#allocation2 + $0x8] sm:$0xff]
          %v598 = vld [vmem:[#allocation2 + $0x10] sm:$0xff]
          %v599 = vld [vmem:[#allocation2 + $0x18] sm:$0xff]
          %v600 = vld [vmem:[#allocation2 + $0x20] sm:$0xff]
          %v601 = vld [vmem:[#allocation2 + $0x28] sm:$0xff]
          %v602 = vld [vmem:[#allocation2 + $0x30] sm:$0xff]
          %v603 = vld [vmem:[#allocation2 + $0x38] sm:$0xff]
          %v604 = vld [vmem:[#allocation2 + $0x40] sm:$0xff]
          %v605 = vld [vmem:[#allocation2 + $0x48] sm:$0xff]
          %v606 = vld [vmem:[#allocation2 + $0x50] sm:$0xff]
          %v607 = vld [vmem:[#allocation2 + $0x58] sm:$0xff]
          %v608 = vld [vmem:[#allocation2 + $0x60] sm:$0xff]
          %v609 = vld [vmem:[#allocation2 + $0x68] sm:$0xff]
          %v610 = vld [vmem:[#allocation2 + $0x70] sm:$0xff]
          %v611 = vld [vmem:[#allocation2 + $0x78] sm:$0xff]
          %613 = vset.pattern.permute.xlu0 0
          %614 = vperm.xlu0 %613, %v580
          %v615 = vpop.permute.xlu0 %614
          %618 = vset.pattern.permute.xlu0 0
          %619 = vperm.xlu0 %618, %v581
          %v620 = vpop.permute.xlu0 %619
          %623 = vset.pattern.permute.xlu0 0
          %624 = vperm.xlu0 %623, %v582
          %v625 = vpop.permute.xlu0 %624
          %628 = vset.pattern.permute.xlu0 0
          %629 = vperm.xlu0 %628, %v583
          %v630 = vpop.permute.xlu0 %629
          %633 = vset.pattern.permute.xlu0 0
          %634 = vperm.xlu0 %633, %v584
          %v635 = vpop.permute.xlu0 %634
          %638 = vset.pattern.permute.xlu0 0
          %639 = vperm.xlu0 %638, %v585
          %v640 = vpop.permute.xlu0 %639
          %643 = vset.pattern.permute.xlu0 0
          %644 = vperm.xlu0 %643, %v586
          %v645 = vpop.permute.xlu0 %644
          %648 = vset.pattern.permute.xlu0 0
          %649 = vperm.xlu0 %648, %v587
          %v650 = vpop.permute.xlu0 %649
          %653 = vset.pattern.permute.xlu0 0
          %654 = vperm.xlu0 %653, %v588
          %v655 = vpop.permute.xlu0 %654
          %658 = vset.pattern.permute.xlu0 0
          %659 = vperm.xlu0 %658, %v589
          %v660 = vpop.permute.xlu0 %659
          %663 = vset.pattern.permute.xlu0 0
          %664 = vperm.xlu0 %663, %v590
          %v665 = vpop.permute.xlu0 %664
          %668 = vset.pattern.permute.xlu0 0
          %669 = vperm.xlu0 %668, %v591
          %v670 = vpop.permute.xlu0 %669
          %673 = vset.pattern.permute.xlu0 0
          %674 = vperm.xlu0 %673, %v592
          %v675 = vpop.permute.xlu0 %674
          %678 = vset.pattern.permute.xlu0 0
          %679 = vperm.xlu0 %678, %v593
          %v680 = vpop.permute.xlu0 %679
          %683 = vset.pattern.permute.xlu0 0
          %684 = vperm.xlu0 %683, %v594
          %v685 = vpop.permute.xlu0 %684
          %688 = vset.pattern.permute.xlu0 0
          %689 = vperm.xlu0 %688, %v595
          %v690 = vpop.permute.xlu0 %689
          %v692 = vmul.f32 %v615, %v596
          %v693 = vmul.f32 %v620, %v597
          %v694 = vmul.f32 %v625, %v598
          %v695 = vmul.f32 %v630, %v599
          %v696 = vmul.f32 %v635, %v600
          %v697 = vmul.f32 %v640, %v601
          %v698 = vmul.f32 %v645, %v602
          %v699 = vmul.f32 %v650, %v603
          %v700 = vmul.f32 %v655, %v604
          %v701 = vmul.f32 %v660, %v605
          %v702 = vmul.f32 %v665, %v606
          %v703 = vmul.f32 %v670, %v607
          %v704 = vmul.f32 %v675, %v608
          %v705 = vmul.f32 %v680, %v609
          %v706 = vmul.f32 %v685, %v610
          %v707 = vmul.f32 %v690, %v611
          %v708 = vpack.c.bf16 %v693, %v692
          %v709 = vpack.c.bf16 %v695, %v694
          %v710 = vpack.c.bf16 %v697, %v696
          %v711 = vpack.c.bf16 %v699, %v698
          %v712 = vpack.c.bf16 %v701, %v700
          %v713 = vpack.c.bf16 %v703, %v702
          %v714 = vpack.c.bf16 %v705, %v704
          %v715 = vpack.c.bf16 %v707, %v706
          %v716 = vld [vmem:[%s3] sm:$0xf]
          %v717 = vld [vmem:[%s3 + $0x4] sm:$0xf]
          %v718 = vld [vmem:[%s3 + $0x8] sm:$0xf]
          %v719 = vld [vmem:[%s3 + $0xc] sm:$0xf]
          %v720 = vld [vmem:[%s3 + $0x10] sm:$0xf]
          %v721 = vld [vmem:[%s3 + $0x14] sm:$0xf]
          %v722 = vld [vmem:[%s3 + $0x18] sm:$0xf]
          %v723 = vld [vmem:[%s3 + $0x1c] sm:$0xf]
          %v724 = vld [vmem:[%s3 + $0x20] sm:$0xf]
          %v725 = vld [vmem:[%s3 + $0x24] sm:$0xf]
          %v726 = vld [vmem:[%s3 + $0x28] sm:$0xf]
          %v727 = vld [vmem:[%s3 + $0x2c] sm:$0xf]
          %v728 = vld [vmem:[%s3 + $0x30] sm:$0xf]
          %v729 = vld [vmem:[%s3 + $0x34] sm:$0xf]
          %v730 = vld [vmem:[%s3 + $0x38] sm:$0xf]
          %v731 = vld [vmem:[%s3 + $0x3c] sm:$0xf]
          %v732 = vld [vmem:[%s4] sm:$0x1]
          %v734 = vlaneseq
          %v735 = vshrl.u32 %v734, 7
          %v736 = vsub.s32 0, %v735
          %v737 = vrot.slane %v732, %v736
          %v755 = vunpack.c.l.b16 %v716
          %v756 = vunpack.c.l.b16 %v717
          %v757 = vunpack.c.l.b16 %v718
          %v758 = vunpack.c.l.b16 %v719
          %v759 = vunpack.c.l.b16 %v720
          %v760 = vunpack.c.l.b16 %v721
          %v761 = vunpack.c.l.b16 %v722
          %v762 = vunpack.c.l.b16 %v723
          %v763 = vunpack.c.l.b16 %v724
          %v764 = vunpack.c.l.b16 %v725
          %v765 = vunpack.c.l.b16 %v726
          %v766 = vunpack.c.l.b16 %v727
          %v767 = vunpack.c.l.b16 %v728
          %v768 = vunpack.c.l.b16 %v729
          %v769 = vunpack.c.l.b16 %v730
          %v770 = vunpack.c.l.b16 %v731
          %v771 = vpack.c.b16 %v756, %v755
          %v772 = vpack.c.b16 %v758, %v757
          %v773 = vpack.c.b16 %v760, %v759
          %v774 = vpack.c.b16 %v762, %v761
          %v775 = vpack.c.b16 %v764, %v763
          %v776 = vpack.c.b16 %v766, %v765
          %v777 = vpack.c.b16 %v768, %v767
          %v778 = vpack.c.b16 %v770, %v769
          %787 = vmatprep.subr.bf16.mxu0 0
          %788 = vmatpush1.bf16.msra.mxu0 %v771
          %789 = vmatprep.subr.bf16.mxu0 0
          %790 = vmatpush1.bf16.msra.mxu0 %v772
          %791 = vmatprep.subr.bf16.mxu0 0
          %792 = vmatpush1.bf16.msra.mxu0 %v773
          %793 = vmatprep.subr.bf16.mxu0 0
          %794 = vmatpush1.bf16.msra.mxu0 %v774
          %795 = vmatprep.subr.bf16.mxu0 0
          %796 = vmatpush1.bf16.msra.mxu0 %v775
          %797 = vmatprep.subr.bf16.mxu0 0
          %798 = vmatpush1.bf16.msra.mxu0 %v776
          %799 = vmatprep.subr.bf16.mxu0 0
          %800 = vmatpush1.bf16.msra.mxu0 %v777
          %801 = vmatprep.subr.bf16.mxu0 0
          %802 = vmatpush1.bf16.msra.mxu0 %v778
          %803 = vmatprep.subr.bf16.mxu0 0
          %804 = vmatpush1.bf16.msra.mxu0 0
          %805 = vmatprep.subr.bf16.mxu0 0
          %806 = vmatpush1.bf16.msra.mxu0 0
          %807 = vmatprep.subr.bf16.mxu0 0
          %808 = vmatpush1.bf16.msra.mxu0 0
          %809 = vmatprep.subr.bf16.mxu0 0
          %810 = vmatpush1.bf16.msra.mxu0 0
          %811 = vmatprep.subr.bf16.mxu0 0
          %812 = vmatpush1.bf16.msra.mxu0 0
          %813 = vmatprep.subr.bf16.mxu0 0
          %814 = vmatpush1.bf16.msra.mxu0 0
          %815 = vmatprep.subr.bf16.mxu0 0
          %816 = vmatpush1.bf16.msra.mxu0 0
          %817 = vmatprep.subr.bf16.mxu0 0
          %818 = vmatpush1.bf16.msra.mxu0 0
          %819 = vmatprep.mubr.bf16.mxu0 0
          %820 = vmatmul.mubr.bf16.gmra.mrb[0].mxu0 %v708
          %v821 = vpop.f32.mrb[0].mxu0
          %v822 = vadd.f32 %v737, %v821
          %v823 = vpop.f32.mrb[0].mxu0
          %v824 = vpop.f32.mrb[0].mxu0
          %v825 = vadd.f32 %v737, %v824
          %v826 = vpop.f32.mrb[0].mxu0
          %827 = vmatprep.mubr.bf16.mxu0 0
          %828 = vmatmul.mubr.bf16.gmra.mrb[0].mxu0 %v709
          %v829 = vpop.f32.mrb[0].mxu0
          %v830 = vadd.f32 %v737, %v829
          %v831 = vpop.f32.mrb[0].mxu0
          %v832 = vpop.f32.mrb[0].mxu0
          %v833 = vadd.f32 %v737, %v832
          %v834 = vpop.f32.mrb[0].mxu0
          %835 = vmatprep.mubr.bf16.mxu0 0
          %836 = vmatmul.mubr.bf16.gmra.mrb[0].mxu0 %v710
          %v837 = vpop.f32.mrb[0].mxu0
          %v838 = vadd.f32 %v737, %v837
          %v839 = vpop.f32.mrb[0].mxu0
          %v840 = vpop.f32.mrb[0].mxu0
          %v841 = vadd.f32 %v737, %v840
          %v842 = vpop.f32.mrb[0].mxu0
          %843 = vmatprep.mubr.bf16.mxu0 0
          %844 = vmatmul.mubr.bf16.gmra.mrb[0].mxu0 %v711
          %v845 = vpop.f32.mrb[0].mxu0
          %v846 = vadd.f32 %v737, %v845
          %v847 = vpop.f32.mrb[0].mxu0
          %v848 = vpop.f32.mrb[0].mxu0
          %v849 = vadd.f32 %v737, %v848
          %v850 = vpop.f32.mrb[0].mxu0
          %851 = vmatprep.mubr.bf16.mxu0 0
          %852 = vmatmul.mubr.bf16.gmra.mrb[0].mxu0 %v712
          %v853 = vpop.f32.mrb[0].mxu0
          %v854 = vadd.f32 %v737, %v853
          %v855 = vpop.f32.mrb[0].mxu0
          %v856 = vpop.f32.mrb[0].mxu0
          %v857 = vadd.f32 %v737, %v856
          %v858 = vpop.f32.mrb[0].mxu0
          %859 = vmatprep.mubr.bf16.mxu0 0
          %860 = vmatmul.mubr.bf16.gmra.mrb[0].mxu0 %v713
          %v861 = vpop.f32.mrb[0].mxu0
          %v862 = vadd.f32 %v737, %v861
          %v863 = vpop.f32.mrb[0].mxu0
          %v864 = vpop.f32.mrb[0].mxu0
          %v865 = vadd.f32 %v737, %v864
          %v866 = vpop.f32.mrb[0].mxu0
          %867 = vmatprep.mubr.bf16.mxu0 0
          %868 = vmatmul.mubr.bf16.gmra.mrb[0].mxu0 %v714
          %v869 = vpop.f32.mrb[0].mxu0
          %v870 = vadd.f32 %v737, %v869
          %v871 = vpop.f32.mrb[0].mxu0
          %v872 = vpop.f32.mrb[0].mxu0
          %v873 = vadd.f32 %v737, %v872
          %v874 = vpop.f32.mrb[0].mxu0
          %875 = vmatprep.mubr.bf16.mxu0 0
          %876 = vmatmul.mubr.bf16.gmra.mrb[0].mxu0 %v715
          %v877 = vpop.f32.mrb[0].mxu0
          %v878 = vadd.f32 %v737, %v877
          %v879 = vpop.f32.mrb[0].mxu0
          %v880 = vpop.f32.mrb[0].mxu0
          %v881 = vadd.f32 %v737, %v880
          %v882 = vpop.f32.mrb[0].mxu0
          %883 = vdwg.mxu0
          %884 = vst [vmem:[%s332] sm:$0xff] %v822
          %885 = vst [vmem:[%s332 + $0x8] sm:$0xff] %v825
          %886 = vst [vmem:[%s332 + $0x10] sm:$0xff] %v830
          %887 = vst [vmem:[%s332 + $0x18] sm:$0xff] %v833
          %888 = vst [vmem:[%s332 + $0x20] sm:$0xff] %v838
          %889 = vst [vmem:[%s332 + $0x28] sm:$0xff] %v841
          %890 = vst [vmem:[%s332 + $0x30] sm:$0xff] %v846
          %891 = vst [vmem:[%s332 + $0x38] sm:$0xff] %v849
          %892 = vst [vmem:[%s332 + $0x40] sm:$0xff] %v854
          %893 = vst [vmem:[%s332 + $0x48] sm:$0xff] %v857
          %894 = vst [vmem:[%s332 + $0x50] sm:$0xff] %v862
          %895 = vst [vmem:[%s332 + $0x58] sm:$0xff] %v865
          %896 = vst [vmem:[%s332 + $0x60] sm:$0xff] %v870
          %897 = vst [vmem:[%s332 + $0x68] sm:$0xff] %v873
          %898 = vst [vmem:[%s332 + $0x70] sm:$0xff] %v878
          %899 = vst [vmem:[%s332 + $0x78] sm:$0xff] %v881
        $region86: #{_gcn_atp_conv_impl.1} parent=73 // pred_fallthru
          _
        %s900 = smul.u32 16, %s20
        %p901 = scmp.lt.s32.totalorder %s900, 31
        %s902 = scalar_select %p901, %s900, 31
        %s903 = smul.addr %s902, 8
        %s904 = scalar_lea.vmem %s5, %s903
        // Predicated region
        $region87: #{_gcn_atp_conv_impl.1} parent=73 // pred_check
          %p905 = pneg %p168
        $region88: #{_gcn_atp_conv_impl.1} parent=73 // pred_check_branch
          %907 = sbr.rel (%p905) target = $region90
        $region89: #{_gcn_atp_conv_impl.1} parent=73 // pred_region
          %s908 = smul.u32 16, %s20
        $region90: #{_gcn_atp_conv_impl.1} parent=73 // pred_fallthru
          _
      $region74: #{_gcn_atp_conv_impl.1} parent=5 // pred_fallthru
        _
      %p909 = scmp.le.s32.totalorder 2, %s11
      // Predicated region
      $region91: #{_gcn_atp_conv_impl.1} parent=5 // pred_check
        %p910 = pneg %p909
      $region92: #{_gcn_atp_conv_impl.1} parent=5 // pred_check_branch
        %912 = sbr.rel (%p910) target = $region94
      $region93: #{_gcn_atp_conv_impl.1} parent=5 // pred_region
        %s913 = ssub.s32 %s11, 2
        // Predicated region
        $region95: #{_gcn_atp_conv_impl.1} parent=93 // pred_check
          %p914 = pneg %p174
        $region96: #{_gcn_atp_conv_impl.1} parent=93 // pred_check_branch
          %916 = sbr.rel (%p914) target = $region98
        $region97: #{_gcn_atp_conv_impl.1} parent=93 // pred_region
          %s917 = smul.u32 16, %s22
          %p918 = scmp.lt.s32.totalorder %s917, 31
          %s919 = scalar_select %p918, %s917, 31
          %s920 = smul.addr %s919, 8
          %s921 = scalar_lea.vmem %s5, %s920
        $region98: #{_gcn_atp_conv_impl.1} parent=93 // pred_fallthru
          _
      $region94: #{_gcn_atp_conv_impl.1} parent=5 // pred_fallthru
        _
    $region6: #{_gcn_atp_conv_impl.1} parent=1 // loop_footer
      %s15 = sadd.s32 1, %s11
    $region7: #{_gcn_atp_conv_impl.1} parent=1 // loop_footer_branch
      %10 = sbr.rel target = $region3
    $region8: #{_gcn_atp_conv_impl.1} parent=1 // loop_exit
      _

// kernel: _gcn_atp_conv_impl.1
$region0: #{_gcn_atp_conv_impl.1}
  #allocation0 [shape = 'u32[]', space=smem, size = 0x4, offset = 0x4, fixed_abs, tag = 'smem constant byte address 0x4 - core index']
  #allocation1 [shape = 'u32[144,128]{1,0:T(1,128)}', space=vmem, size = 0x12000, scoped, tag = 'internal scratch']
  #allocation2 [shape = 'f32[128,128]{1,0:T(8,128)}', space=vmem, size = 0x10000, scoped, tag = 'scratch operand']
  %s0 = inlined_call_operand.vmem [shape: s8[256,256], index: 0, kind: input, shape index: {}]
  %s1 = inlined_call_operand.vmem [shape: bf16[256,128], index: 1, kind: input, shape index: {}]
  %s2 = inlined_call_operand.vmem [shape: f32[256,1], index: 2, kind: input, shape index: {}]
  %s3 = inlined_call_operand.vmem [shape: bf16[128,128], index: 3, kind: input, shape index: {}]
  %s4 = inlined_call_operand.vmem [shape: f32[1,128], index: 4, kind: input, shape index: {}]
  %s5 = inlined_call_operand.vmem [shape: f32[256,128], index: 5, kind: output, shape index: {}]
  %s6 = sld [smem:[#allocation0]]
  $region99: #{_gcn_atp_conv_impl.1} parent=0
    _
  %s8 = ssub.s32 1, %s6
  %s9 = scalar_select 0, %s8, %s6
  $region1: #{_gcn_atp_conv_impl.1} parent=0
    #allocation3 [shape = 'u8[32768]{0}', space=vmem, size = 0x8000, scoped, tag = 'input window, operand 0']
    loop: start=0, step=1, limit=6
    $region2: #{_gcn_atp_conv_impl.1} parent=1 // loop_pre_header
      _
    $region3: #{_gcn_atp_conv_impl.1} parent=1 // loop_header
      %s11 = sphi 0, %s15
      %p12 = scmp.ge.s32.totalorder %s11, 6
      %s18 = sphi 0, %s30
      %s19 = sphi 0, %s26
      %s20 = sphi 0, %s18
      %s21 = sphi 0, %s19
      %s22 = sphi 0, %s20
      %s23 = sphi 0, %s21
      %s35 = sphi 0, %s37
      %s38 = sphi 0, %s35
      %s39 = sphi 0, %s38
      %s55 = sphi 0, %s39
      %s61 = sphi 0, %s63
      %s64 = sphi 0, %s61
      %s65 = sphi 0, %s64
      %s81 = sphi 0, %s65
      %s87 = sphi 0, %s89
      %s90 = sphi 0, %s87
      %s91 = sphi 0, %s90
      %s107 = sphi 0, %s91
      %s111 = sphi 0, %s111
      %s113 = sphi 0, %s111
      %s114 = sphi 0, %s113
      %s128 = sphi 0, %s114
      %s132 = sphi 0, %s132
      %s134 = sphi 0, %s132
      %s135 = sphi 0, %s134
      %s149 = sphi 0, %s135
      %s155 = sphi 0, %s157
      %s158 = sphi 0, %s155
      %s159 = sphi 0, %s158
      %s175 = sphi 0, %s159
    $region4: #{_gcn_atp_conv_impl.1} parent=1 // loop_header_branch
      %14 = sbr.rel (%p12) target = $region8
    $region5: #{_gcn_atp_conv_impl.1} parent=1 // loop_body
      %s16 = ssub.s32 %s11, 1
      %s17 = ssub.s32 %s11, 2
      %s24 = sadd.s32 1, %s19
      %p25 = scmp.ge.s32.totalorder %s24, 2
      %s26 = scalar_select %p25, 0, %s24
      %s27 = sadd.s32 1, %s18
      %s28 = scalar_select %p25, %s27, %s18
      %p29 = scmp.ge.s32.totalorder %s28, 2
      %s30 = scalar_select %p29, 0, %s28
      %s31 = ssub.s32 %s18, %s30
      %s32 = ssub.s32 %s19, %s26
      %s33 = sor.u32 %s31, %s32
      %p34 = scmp.eq.s32.totalorder %s33, 0
      %s36 = sadd.s32 %s35, 1
      %s37 = scalar_select %p34, %s35, %s36
      %p40 = pneg %p34
      %p41 = scmp.eq.s32.totalorder %s11, 3
      %p42 = por %p40, %p41
      %p43 = scmp.ne.s32.totalorder %s35, %s38
      %p44 = scmp.eq.s32.totalorder %s11, 0
      %p45 = por %p43, %p44
      %p46 = scmp.ne.s32.totalorder %s35, %s38
      %p47 = scmp.eq.s32.totalorder %s16, 3
      %p48 = por %p46, %p47
      %p49 = scmp.ne.s32.totalorder %s38, %s39
      %p50 = scmp.eq.s32.totalorder %s16, 0
      %p51 = por %p49, %p50
      %p52 = scmp.ne.s32.totalorder %s38, %s39
      %p53 = scmp.eq.s32.totalorder %s17, 3
      %p54 = por %p52, %p53
      %p56 = scmp.ne.s32.totalorder %s39, %s55
      %p57 = scmp.eq.s32.totalorder %s17, 0
      %p58 = por %p56, %p57
      %s59 = ssub.s32 %s19, %s26
      %p60 = scmp.eq.s32.totalorder %s59, 0
      %s62 = sadd.s32 %s61, 1
      %s63 = scalar_select %p60, %s61, %s62
      %p66 = pneg %p60
      %p67 = scmp.eq.s32.totalorder %s11, 3
      %p68 = por %p66, %p67
      %p69 = scmp.ne.s32.totalorder %s61, %s64
      %p70 = scmp.eq.s32.totalorder %s11, 0
      %p71 = por %p69, %p70
      %p72 = scmp.ne.s32.totalorder %s61, %s64
      %p73 = scmp.eq.s32.totalorder %s16, 3
      %p74 = por %p72, %p73
      %p75 = scmp.ne.s32.totalorder %s64, %s65
      %p76 = scmp.eq.s32.totalorder %s16, 0
      %p77 = por %p75, %p76
      %p78 = scmp.ne.s32.totalorder %s64, %s65
      %p79 = scmp.eq.s32.totalorder %s17, 3
      %p80 = por %p78, %p79
      %p82 = scmp.ne.s32.totalorder %s65, %s81
      %p83 = scmp.eq.s32.totalorder %s17, 0
      %p84 = por %p82, %p83
      %s85 = ssub.s32 %s18, %s30
      %p86 = scmp.eq.s32.totalorder %s85, 0
      %s88 = sadd.s32 %s87, 1
      %s89 = scalar_select %p86, %s87, %s88
      %p92 = pneg %p86
      %p93 = scmp.eq.s32.totalorder %s11, 3
      %p94 = por %p92, %p93
      %p95 = scmp.ne.s32.totalorder %s87, %s90
      %p96 = scmp.eq.s32.totalorder %s11, 0
      %p97 = por %p95, %p96
      %p98 = scmp.ne.s32.totalorder %s87, %s90
      %p99 = scmp.eq.s32.totalorder %s16, 3
      %p100 = por %p98, %p99
      %p101 = scmp.ne.s32.totalorder %s90, %s91
      %p102 = scmp.eq.s32.totalorder %s16, 0
      %p103 = por %p101, %p102
      %p104 = scmp.ne.s32.totalorder %s90, %s91
      %p105 = scmp.eq.s32.totalorder %s17, 3
      %p106 = por %p104, %p105
      %p108 = scmp.ne.s32.totalorder %s91, %s107
      %p109 = scmp.eq.s32.totalorder %s17, 0
      %p110 = por %p108, %p109
      %s112 = sadd.s32 %s111, 1
      %p115 = scmp.eq.s32.totalorder %s11, 3
      %p116 = scmp.ne.s32.totalorder %s111, %s113
      %p117 = scmp.eq.s32.totalorder %s11, 0
      %p118 = por %p116, %p117
      %p119 = scmp.ne.s32.totalorder %s111, %s113
      %p120 = scmp.eq.s32.totalorder %s16, 3
      %p121 = por %p119, %p120
      %p122 = scmp.ne.s32.totalorder %s113, %s114
      %p123 = scmp.eq.s32.totalorder %s16, 0
      %p124 = por %p122, %p123
      %p125 = scmp.ne.s32.totalorder %s113, %s114
      %p126 = scmp.eq.s32.totalorder %s17, 3
      %p127 = por %p125, %p126
      %p129 = scmp.ne.s32.totalorder %s114, %s128
      %p130 = scmp.eq.s32.totalorder %s17, 0
      %p131 = por %p129, %p130
      %s133 = sadd.s32 %s132, 1
      %p136 = scmp.eq.s32.totalorder %s11, 3
      %p137 = scmp.ne.s32.totalorder %s132, %s134
      %p138 = scmp.eq.s32.totalorder %s11, 0
      %p139 = por %p137, %p138
      %p140 = scmp.ne.s32.totalorder %s132, %s134
      %p141 = scmp.eq.s32.totalorder %s16, 3
      %p142 = por %p140, %p141
      %p143 = scmp.ne.s32.totalorder %s134, %s135
      %p144 = scmp.eq.s32.totalorder %s16, 0
      %p145 = por %p143, %p144
      %p146 = scmp.ne.s32.totalorder %s134, %s135
      %p147 = scmp.eq.s32.totalorder %s17, 3
      %p148 = por %p146, %p147
      %p150 = scmp.ne.s32.totalorder %s135, %s149
      %p151 = scmp.eq.s32.totalorder %s17, 0
      %p152 = por %p150, %p151
      %s153 = ssub.s32 %s18, %s30
      %p154 = scmp.eq.s32.totalorder %s153, 0
      %s156 = sadd.s32 %s155, 1
      %s157 = scalar_select %p154, %s155, %s156
      %p160 = pneg %p154
      %p161 = scmp.eq.s32.totalorder %s11, 3
      %p162 = por %p160, %p161
      %p163 = scmp.ne.s32.totalorder %s155, %s158
      %p164 = scmp.eq.s32.totalorder %s11, 0
      %p165 = por %p163, %p164
      %p166 = scmp.ne.s32.totalorder %s155, %s158
      %p167 = scmp.eq.s32.totalorder %s16, 3
      %p168 = por %p166, %p167
      %p169 = scmp.ne.s32.totalorder %s158, %s159
      %p170 = scmp.eq.s32.totalorder %s16, 0
      %p171 = por %p169, %p170
      %p172 = scmp.ne.s32.totalorder %s158, %s159
      %p173 = scmp.eq.s32.totalorder %s17, 3
      %p174 = por %p172, %p173
      %p176 = scmp.ne.s32.totalorder %s159, %s175
      %p177 = scmp.eq.s32.totalorder %s17, 0
      %p178 = por %p176, %p177
      %p179 = scmp.le.s32.totalorder 1, %s11
      %p180 = scmp.lt.s32.totalorder %s11, 5
      %p181 = pnand %p179, %p180
      %p182 = pneg %p181
      // Predicated region
      $region9: #{_gcn_atp_conv_impl.1} parent=5 // pred_check
        _
      $region10: #{_gcn_atp_conv_impl.1} parent=5 // pred_check_branch
        %184 = sbr.rel (%p181) target = $region12
      $region11: #{_gcn_atp_conv_impl.1} parent=5 // pred_region
        %s185 = ssub.s32 %s11, 1
        // Predicated region
        $region13: #{_gcn_atp_conv_impl.1} parent=11 // pred_check
          %p186 = pneg %p124
        $region14: #{_gcn_atp_conv_impl.1} parent=11 // pred_check_branch
          %188 = sbr.rel (%p186) target = $region16
        $region15: #{_gcn_atp_conv_impl.1} parent=11 // pred_region
          _
        $region16: #{_gcn_atp_conv_impl.1} parent=11 // pred_fallthru
          _
        // Predicated region
        $region17: #{_gcn_atp_conv_impl.1} parent=11 // pred_check
          %p189 = pneg %p145
        $region18: #{_gcn_atp_conv_impl.1} parent=11 // pred_check_branch
          %191 = sbr.rel (%p189) target = $region20
        $region19: #{_gcn_atp_conv_impl.1} parent=11 // pred_region
          _
        $region20: #{_gcn_atp_conv_impl.1} parent=11 // pred_fallthru
          _
      $region12: #{_gcn_atp_conv_impl.1} parent=5 // pred_fallthru
        _
      %p192 = scmp.lt.s32.totalorder %s11, 4
      // Predicated region
      $region21: #{_gcn_atp_conv_impl.1} parent=5 // pred_check
        %p193 = pneg %p192
      $region22: #{_gcn_atp_conv_impl.1} parent=5 // pred_check_branch
        %195 = sbr.rel (%p193) target = $region24
      $region23: #{_gcn_atp_conv_impl.1} parent=5 // pred_region
        // Predicated region
        $region25: #{_gcn_atp_conv_impl.1} parent=23 // pred_check
          %p196 = pneg %p45
        $region26: #{_gcn_atp_conv_impl.1} parent=23 // pred_check_branch
          %198 = sbr.rel (%p196) target = $region28
        $region27: #{_gcn_atp_conv_impl.1} parent=23 // pred_region
          %s199 = sand.u32 %s35, 1
          %s200 = sand.u32 %s35, 1
          %s201 = smul.addr %s200, 32
          %s202 = scalar_lea.vmem [#allocation3], %s201
          %s203 = smul.u32 4, %s18
          %s204 = smul.addr %s203, 2
          %s205 = sadd.s32 %s19, %s204
          %s206 = smul.addr %s205, 8
          %s207 = scalar_lea.vmem %s0, %s206
          // Predicated region
          $region29: #{_gcn_atp_conv_impl.1} parent=27 // pred_check
            _
          $region30: #{_gcn_atp_conv_impl.1} parent=27 // pred_check_branch
            %209 = sbr.rel (0) target = $region32
          $region31: #{_gcn_atp_conv_impl.1} parent=27 // pred_region
            // Predicated region
            $region33: #{_gcn_atp_conv_impl.1} parent=31 // pred_check
              _
            $region34: #{_gcn_atp_conv_impl.1} parent=31 // pred_check_branch
              %211 = sbr.rel (0) target = $region36
            $region35: #{_gcn_atp_conv_impl.1} parent=31 // pred_region
              // Predicated region
              $region48: #{_gcn_atp_conv_impl.1} parent=35 // pred_check
                _
              $region49: #{_gcn_atp_conv_impl.1} parent=35 // pred_check_branch
                %232 = sbr.rel (0) target = $region51
              $region50: #{_gcn_atp_conv_impl.1} parent=35 // pred_region
                loop: start=0, step=1, limit=1
                $region52: #{_gcn_atp_conv_impl.1} parent=50 // loop_pre_header
                  _
                $region53: #{_gcn_atp_conv_impl.1} parent=50 // loop_header
                  %s234 = sphi 0, %s238
                  %p235 = scmp.ge.s32.totalorder %s234, 1
                  %s239 = sphi %s207, %s207
                  %s240 = sphi %s202, %s202
                $region54: #{_gcn_atp_conv_impl.1} parent=50 // loop_header_branch
                  %237 = sbr.rel (%p235) target = $region58
                $region55: #{_gcn_atp_conv_impl.1} parent=50 // loop_body
                  %v241 = vld [vmem:[%s239] sm:$0xff]
                  %242 = vst [vmem:[%s240] sm:$0xff] %v241
                  %v243 = vld [vmem:[%s239 + $0x10] sm:$0xff]
                  %244 = vst [vmem:[%s240 + $0x8] sm:$0xff] %v243
                  %v245 = vld [vmem:[%s239 + $0x20] sm:$0xff]
                  %246 = vst [vmem:[%s240 + $0x10] sm:$0xff] %v245
                  %v247 = vld [vmem:[%s239 + $0x30] sm:$0xff]
                  %248 = vst [vmem:[%s240 + $0x18] sm:$0xff] %v247
                $region56: #{_gcn_atp_conv_impl.1} parent=50 // loop_footer
                  %s238 = sadd.s32 1, %s234
                $region57: #{_gcn_atp_conv_impl.1} parent=50 // loop_footer_branch
                  %233 = sbr.rel target = $region53
                $region58: #{_gcn_atp_conv_impl.1} parent=50 // loop_exit
                  _
              $region51: #{_gcn_atp_conv_impl.1} parent=35 // pred_fallthru
                _
              // Predicated region
              $region59: #{_gcn_atp_conv_impl.1} parent=35 // pred_check
                _
              $region60: #{_gcn_atp_conv_impl.1} parent=35 // pred_check_branch
                %250 = sbr.rel target = $region62
              $region61: #{_gcn_atp_conv_impl.1} parent=35 // pred_region
                _
              $region62: #{_gcn_atp_conv_impl.1} parent=35 // pred_fallthru
                _
            $region36: #{_gcn_atp_conv_impl.1} parent=31 // pred_fallthru
              _
            // Predicated region
            $region37: #{_gcn_atp_conv_impl.1} parent=31 // pred_check
              _
            $region38: #{_gcn_atp_conv_impl.1} parent=31 // pred_check_branch
              %213 = sbr.rel target = $region40
            $region39: #{_gcn_atp_conv_impl.1} parent=31 // pred_region
              loop: start=0, step=1, limit=1
              $region41: #{_gcn_atp_conv_impl.1} parent=39 // loop_pre_header
                _
              $region42: #{_gcn_atp_conv_impl.1} parent=39 // loop_header
                %s216 = sphi 0, %s220
                %p217 = scmp.ge.s32.totalorder %s216, 1
                %s221 = sphi %s207, %s207
                %s222 = sphi %s202, %s202
              $region43: #{_gcn_atp_conv_impl.1} parent=39 // loop_header_branch
                %219 = sbr.rel (%p217) target = $region47
              $region44: #{_gcn_atp_conv_impl.1} parent=39 // loop_body
                %v223 = vld [vmem:[%s221] sm:$0xff]
                %224 = vst [vmem:[%s222] sm:$0xff] %v223
                %v225 = vld [vmem:[%s221 + $0x10] sm:$0xff]
                %226 = vst [vmem:[%s222 + $0x8] sm:$0xff] %v225
                %v227 = vld [vmem:[%s221 + $0x20] sm:$0xff]
                %228 = vst [vmem:[%s222 + $0x10] sm:$0xff] %v227
                %v229 = vld [vmem:[%s221 + $0x30] sm:$0xff]
                %230 = vst [vmem:[%s222 + $0x18] sm:$0xff] %v229
              $region45: #{_gcn_atp_conv_impl.1} parent=39 // loop_footer
                %s220 = sadd.s32 1, %s216
              $region46: #{_gcn_atp_conv_impl.1} parent=39 // loop_footer_branch
                %215 = sbr.rel target = $region42
              $region47: #{_gcn_atp_conv_impl.1} parent=39 // loop_exit
                _
            $region40: #{_gcn_atp_conv_impl.1} parent=31 // pred_fallthru
              _
          $region32: #{_gcn_atp_conv_impl.1} parent=27 // pred_fallthru
            _
          %251 = vnop
        $region28: #{_gcn_atp_conv_impl.1} parent=23 // pred_fallthru
          _
        // Predicated region
        $region63: #{_gcn_atp_conv_impl.1} parent=23 // pred_check
          %p252 = pneg %p71
        $region64: #{_gcn_atp_conv_impl.1} parent=23 // pred_check_branch
          %254 = sbr.rel (%p252) target = $region66
        $region65: #{_gcn_atp_conv_impl.1} parent=23 // pred_region
          %s255 = smul.u32 16, %s19
          %p256 = scmp.lt.s32.totalorder %s255, 31
          %s257 = scalar_select %p256, %s255, 31
          %s258 = smul.addr %s257, 4
          %s259 = scalar_lea.vmem %s1, %s258
          %s260 = smul.u32 16, %s19
        $region66: #{_gcn_atp_conv_impl.1} parent=23 // pred_fallthru
          _
        // Predicated region
        $region67: #{_gcn_atp_conv_impl.1} parent=23 // pred_check
          %p261 = pneg %p97
        $region68: #{_gcn_atp_conv_impl.1} parent=23 // pred_check_branch
          %263 = sbr.rel (%p261) target = $region70
        $region69: #{_gcn_atp_conv_impl.1} parent=23 // pred_region
          %s264 = smul.u32 16, %s18
          %p265 = scmp.lt.s32.totalorder %s264, 31
          %s266 = scalar_select %p265, %s264, 31
          %s267 = smul.addr %s266, 8
          %s268 = scalar_lea.vmem %s2, %s267
          %s269 = smul.u32 16, %s18
        $region70: #{_gcn_atp_conv_impl.1} parent=23 // pred_fallthru
          _
      $region24: #{_gcn_atp_conv_impl.1} parent=5 // pred_fallthru
        _
      %p270 = scmp.le.s32.totalorder 1, %s11
      %p271 = scmp.lt.s32.totalorder %s11, 5
      %p272 = pnand %p270, %p271
      %p273 = pneg %p272
      // Predicated region
      $region71: #{_gcn_atp_conv_impl.1} parent=5 // pred_check
        _
      $region72: #{_gcn_atp_conv_impl.1} parent=5 // pred_check_branch
        %275 = sbr.rel (%p272) target = $region74
      $region73: #{_gcn_atp_conv_impl.1} parent=5 // pred_region
        %s276 = ssub.s32 %s11, 1
        %s277 = sand.u32 %s38, 1
        %s278 = sand.u32 %s38, 1
        %s279 = smul.addr %s278, 32
        %s280 = scalar_lea.vmem [#allocation3], %s279
        // Predicated region
        $region75: #{_gcn_atp_conv_impl.1} parent=73 // pred_check
          %p281 = pneg %p51
        $region76: #{_gcn_atp_conv_impl.1} parent=73 // pred_check_branch
          %283 = sbr.rel (%p281) target = $region78
        $region77: #{_gcn_atp_conv_impl.1} parent=73 // pred_region
          _
        $region78: #{_gcn_atp_conv_impl.1} parent=73 // pred_fallthru
          _
        %s284 = sand.u32 %s38, 1
        %s285 = sand.u32 %s38, 1
        %s286 = smul.addr %s285, 32
        %s287 = scalar_lea.vmem [#allocation3], %s286
        %p288 = pneg %p51
        %p289 = pneg %p48
        %s290 = smul.u32 16, %s21
        %p291 = scmp.lt.s32.totalorder %s290, 31
        %s292 = scalar_select %p291, %s290, 31
        %s293 = smul.addr %s292, 4
        %s294 = scalar_lea.vmem %s1, %s293
        %p295 = pneg %p77
        %p296 = pneg %p74
        %s297 = smul.u32 16, %s20
        %p298 = scmp.lt.s32.totalorder %s297, 31
        %s299 = scalar_select %p298, %s297, 31
        %s300 = smul.addr %s299, 8
        %s301 = scalar_lea.vmem %s2, %s300
        %p302 = pneg %p103
        %p303 = pneg %p100
        %p304 = pneg %p124
        %p305 = pneg %p121
        %p306 = pneg %p145
        %p307 = pneg %p142
        %p308 = pneg %p171
        %p309 = pneg %p168
        %s310 = smul.u32 16, %s20
        %p311 = scmp.lt.s32.totalorder %s310, 31
        %s312 = scalar_select %p311, %s310, 31
        %s313 = smul.addr %s312, 8
        %s314 = scalar_lea.vmem %s5, %s313
        %s315 = smul.u32 4, %s20
        %s316 = smul.u32 16, %s21
        %p317 = scmp.lt.s32.totalorder %s316, 31
        %s318 = scalar_select %p317, %s316, 31
        %s319 = smul.addr %s318, 4
        %s320 = scalar_lea.vmem %s1, %s319
        %s321 = smul.u32 16, %s21
        %s322 = smul.u32 16, %s20
        %p323 = scmp.lt.s32.totalorder %s322, 31
        %s324 = scalar_select %p323, %s322, 31
        %s325 = smul.addr %s324, 8
        %s326 = scalar_lea.vmem %s2, %s325
        %s327 = smul.u32 16, %s20
        %s328 = smul.u32 16, %s20
        %p329 = scmp.lt.s32.totalorder %s328, 31
        %s330 = scalar_select %p329, %s328, 31
        %s331 = smul.addr %s330, 8
        %s332 = scalar_lea.vmem %s5, %s331
        %s333 = smul.u32 16, %s20
        %p335 = scmp.eq.s32.totalorder %s21, 0
        // Predicated region
        $region79: #{_gcn_atp_conv_impl.1} parent=73 // pred_check
          %p336 = pneg %p335
        $region80: #{_gcn_atp_conv_impl.1} parent=73 // pred_check_branch
          %338 = sbr.rel (%p336) target = $region82
        $region81: #{_gcn_atp_conv_impl.1} parent=73 // pred_region
          %339 = vst [vmem:[#allocation2] sm:$0xff] 0.0
          %340 = vst [vmem:[#allocation2 + $0x8] sm:$0xff] 0.0
          %341 = vst [vmem:[#allocation2 + $0x10] sm:$0xff] 0.0
          %342 = vst [vmem:[#allocation2 + $0x18] sm:$0xff] 0.0
          %343 = vst [vmem:[#allocation2 + $0x20] sm:$0xff] 0.0
          %344 = vst [vmem:[#allocation2 + $0x28] sm:$0xff] 0.0
          %345 = vst [vmem:[#allocation2 + $0x30] sm:$0xff] 0.0
          %346 = vst [vmem:[#allocation2 + $0x38] sm:$0xff] 0.0
          %347 = vst [vmem:[#allocation2 + $0x40] sm:$0xff] 0.0
          %348 = vst [vmem:[#allocation2 + $0x48] sm:$0xff] 0.0
          %349 = vst [vmem:[#allocation2 + $0x50] sm:$0xff] 0.0
          %350 = vst [vmem:[#allocation2 + $0x58] sm:$0xff] 0.0
          %351 = vst [vmem:[#allocation2 + $0x60] sm:$0xff] 0.0
          %352 = vst [vmem:[#allocation2 + $0x68] sm:$0xff] 0.0
          %353 = vst [vmem:[#allocation2 + $0x70] sm:$0xff] 0.0
          %354 = vst [vmem:[#allocation2 + $0x78] sm:$0xff] 0.0
        $region82: #{_gcn_atp_conv_impl.1} parent=73 // pred_fallthru
          _
        %v355 = vld [vmem:[#allocation2] sm:$0xff]
        %v356 = vld [vmem:[#allocation2 + $0x8] sm:$0xff]
        %v357 = vld [vmem:[#allocation2 + $0x10] sm:$0xff]
        %v358 = vld [vmem:[#allocation2 + $0x18] sm:$0xff]
        %v359 = vld [vmem:[#allocation2 + $0x20] sm:$0xff]
        %v360 = vld [vmem:[#allocation2 + $0x28] sm:$0xff]
        %v361 = vld [vmem:[#allocation2 + $0x30] sm:$0xff]
        %v362 = vld [vmem:[#allocation2 + $0x38] sm:$0xff]
        %v363 = vld [vmem:[#allocation2 + $0x40] sm:$0xff]
        %v364 = vld [vmem:[#allocation2 + $0x48] sm:$0xff]
        %v365 = vld [vmem:[#allocation2 + $0x50] sm:$0xff]
        %v366 = vld [vmem:[#allocation2 + $0x58] sm:$0xff]
        %v367 = vld [vmem:[#allocation2 + $0x60] sm:$0xff]
        %v368 = vld [vmem:[#allocation2 + $0x68] sm:$0xff]
        %v369 = vld [vmem:[#allocation2 + $0x70] sm:$0xff]
        %v370 = vld [vmem:[#allocation2 + $0x78] sm:$0xff]
        %v371 = vld [vmem:[%s280] sm:$0xff]
        %v372 = vld [vmem:[%s280 + $0x8] sm:$0xff]
        %v373 = vld [vmem:[%s280 + $0x10] sm:$0xff]
        %v374 = vld [vmem:[%s280 + $0x18] sm:$0xff]
        %v375 = vunpack.c.l.s8.bf16 %v371
        %v376 = vunpack.c.h.s8.bf16 %v371
        %v377 = vunpack.c.l.s8.bf16 %v372
        %v378 = vunpack.c.h.s8.bf16 %v372
        %v379 = vunpack.c.l.s8.bf16 %v373
        %v380 = vunpack.c.h.s8.bf16 %v373
        %v381 = vunpack.c.l.s8.bf16 %v374
        %v382 = vunpack.c.h.s8.bf16 %v374
        %v383 = vld [vmem:[%s320] sm:$0xf]
        %v384 = vld [vmem:[%s320 + $0x4] sm:$0xf]
        %v385 = vld [vmem:[%s320 + $0x8] sm:$0xf]
        %v386 = vld [vmem:[%s320 + $0xc] sm:$0xf]
        %v387 = vld [vmem:[%s320 + $0x10] sm:$0xf]
        %v388 = vld [vmem:[%s320 + $0x14] sm:$0xf]
        %v389 = vld [vmem:[%s320 + $0x18] sm:$0xf]
        %v390 = vld [vmem:[%s320 + $0x1c] sm:$0xf]
        %v391 = vld [vmem:[%s320 + $0x20] sm:$0xf]
        %v392 = vld [vmem:[%s320 + $0x24] sm:$0xf]
        %v393 = vld [vmem:[%s320 + $0x28] sm:$0xf]
        %v394 = vld [vmem:[%s320 + $0x2c] sm:$0xf]
        %v395 = vld [vmem:[%s320 + $0x30] sm:$0xf]
        %v396 = vld [vmem:[%s320 + $0x34] sm:$0xf]
        %v397 = vld [vmem:[%s320 + $0x38] sm:$0xf]
        %v398 = vld [vmem:[%s320 + $0x3c] sm:$0xf]
        %v415 = vunpack.c.l.b16 %v383
        %v416 = vunpack.c.l.b16 %v384
        %v417 = vunpack.c.l.b16 %v385
        %v418 = vunpack.c.l.b16 %v386
        %v419 = vunpack.c.l.b16 %v387
        %v420 = vunpack.c.l.b16 %v388
        %v421 = vunpack.c.l.b16 %v389
        %v422 = vunpack.c.l.b16 %v390
        %v423 = vunpack.c.l.b16 %v391
        %v424 = vunpack.c.l.b16 %v392
        %v425 = vunpack.c.l.b16 %v393
        %v426 = vunpack.c.l.b16 %v394
        %v427 = vunpack.c.l.b16 %v395
        %v428 = vunpack.c.l.b16 %v396
        %v429 = vunpack.c.l.b16 %v397
        %v430 = vunpack.c.l.b16 %v398
        %v431 = vpack.c.b16 %v416, %v415
        %v432 = vpack.c.b16 %v418, %v417
        %v433 = vpack.c.b16 %v420, %v419
        %v434 = vpack.c.b16 %v422, %v421
        %v435 = vpack.c.b16 %v424, %v423
        %v436 = vpack.c.b16 %v426, %v425
        %v437 = vpack.c.b16 %v428, %v427
        %v438 = vpack.c.b16 %v430, %v429
        %447 = vmatprep.subr.bf16.mxu0 0
        %448 = vmatpush1.bf16.msra.mxu0 %v431
        %449 = vmatprep.subr.bf16.mxu0 0
        %450 = vmatpush1.bf16.msra.mxu0 %v432
        %451 = vmatprep.subr.bf16.mxu0 0
        %452 = vmatpush1.bf16.msra.mxu0 %v433
        %453 = vmatprep.subr.bf16.mxu0 0
        %454 = vmatpush1.bf16.msra.mxu0 %v434
        %455 = vmatprep.subr.bf16.mxu0 0
        %456 = vmatpush1.bf16.msra.mxu0 %v435
        %457 = vmatprep.subr.bf16.mxu0 0
        %458 = vmatpush1.bf16.msra.mxu0 %v436
        %459 = vmatprep.subr.bf16.mxu0 0
        %460 = vmatpush1.bf16.msra.mxu0 %v437
        %461 = vmatprep.subr.bf16.mxu0 0
        %462 = vmatpush1.bf16.msra.mxu0 %v438
        %463 = vmatprep.subr.bf16.mxu0 0
        %464 = vmatpush1.bf16.msra.mxu0 0
        %465 = vmatprep.subr.bf16.mxu0 0
        %466 = vmatpush1.bf16.msra.mxu0 0
        %467 = vmatprep.subr.bf16.mxu0 0
        %468 = vmatpush1.bf16.msra.mxu0 0
        %469 = vmatprep.subr.bf16.mxu0 0
        %470 = vmatpush1.bf16.msra.mxu0 0
        %471 = vmatprep.subr.bf16.mxu0 0
        %472 = vmatpush1.bf16.msra.mxu0 0
        %473 = vmatprep.subr.bf16.mxu0 0
        %474 = vmatpush1.bf16.msra.mxu0 0
        %475 = vmatprep.subr.bf16.mxu0 0
        %476 = vmatpush1.bf16.msra.mxu0 0
        %477 = vmatprep.subr.bf16.mxu0 0
        %478 = vmatpush1.bf16.msra.mxu0 0
        %479 = vmatprep.mubr.bf16.mxu0 0
        %480 = vmatmul.mubr.bf16.gmra.mrb[0].mxu0 %v375
        %v481 = vpop.f32.mrb[0].mxu0
        %v482 = vadd.f32 0.0, %v481
        %v483 = vpop.f32.mrb[0].mxu0
        %v484 = vpop.f32.mrb[0].mxu0
        %v485 = vadd.f32 0.0, %v484
        %v486 = vpop.f32.mrb[0].mxu0
        %487 = vmatprep.mubr.bf16.mxu0 0
        %488 = vmatmul.mubr.bf16.gmra.mrb[0].mxu0 %v376
        %v489 = vpop.f32.mrb[0].mxu0
        %v490 = vadd.f32 0.0, %v489
        %v491 = vpop.f32.mrb[0].mxu0
        %v492 = vpop.f32.mrb[0].mxu0
        %v493 = vadd.f32 0.0, %v492
        %v494 = vpop.f32.mrb[0].mxu0
        %495 = vmatprep.mubr.bf16.mxu0 0
        %496 = vmatmul.mubr.bf16.gmra.mrb[0].mxu0 %v377
        %v497 = vpop.f32.mrb[0].mxu0
        %v498 = vadd.f32 0.0, %v497
        %v499 = vpop.f32.mrb[0].mxu0
        %v500 = vpop.f32.mrb[0].mxu0
        %v501 = vadd.f32 0.0, %v500
        %v502 = vpop.f32.mrb[0].mxu0
        %503 = vmatprep.mubr.bf16.mxu0 0
        %504 = vmatmul.mubr.bf16.gmra.mrb[0].mxu0 %v378
        %v505 = vpop.f32.mrb[0].mxu0
        %v506 = vadd.f32 0.0, %v505
        %v507 = vpop.f32.mrb[0].mxu0
        %v508 = vpop.f32.mrb[0].mxu0
        %v509 = vadd.f32 0.0, %v508
        %v510 = vpop.f32.mrb[0].mxu0
        %511 = vmatprep.mubr.bf16.mxu0 0
        %512 = vmatmul.mubr.bf16.gmra.mrb[0].mxu0 %v379
        %v513 = vpop.f32.mrb[0].mxu0
        %v514 = vadd.f32 0.0, %v513
        %v515 = vpop.f32.mrb[0].mxu0
        %v516 = vpop.f32.mrb[0].mxu0
        %v517 = vadd.f32 0.0, %v516
        %v518 = vpop.f32.mrb[0].mxu0
        %519 = vmatprep.mubr.bf16.mxu0 0
        %520 = vmatmul.mubr.bf16.gmra.mrb[0].mxu0 %v380
        %v521 = vpop.f32.mrb[0].mxu0
        %v522 = vadd.f32 0.0, %v521
        %v523 = vpop.f32.mrb[0].mxu0
        %v524 = vpop.f32.mrb[0].mxu0
        %v525 = vadd.f32 0.0, %v524
        %v526 = vpop.f32.mrb[0].mxu0
        %527 = vmatprep.mubr.bf16.mxu0 0
        %528 = vmatmul.mubr.bf16.gmra.mrb[0].mxu0 %v381
        %v529 = vpop.f32.mrb[0].mxu0
        %v530 = vadd.f32 0.0, %v529
        %v531 = vpop.f32.mrb[0].mxu0
        %v532 = vpop.f32.mrb[0].mxu0
        %v533 = vadd.f32 0.0, %v532
        %v534 = vpop.f32.mrb[0].mxu0
        %535 = vmatprep.mubr.bf16.mxu0 0
        %536 = vmatmul.mubr.bf16.gmra.mrb[0].mxu0 %v382
        %v537 = vpop.f32.mrb[0].mxu0
        %v538 = vadd.f32 0.0, %v537
        %v539 = vpop.f32.mrb[0].mxu0
        %v540 = vpop.f32.mrb[0].mxu0
        %v541 = vadd.f32 0.0, %v540
        %v542 = vpop.f32.mrb[0].mxu0
        %543 = vdwg.mxu0
        %v544 = vadd.f32 %v355, %v482
        %v545 = vadd.f32 %v356, %v485
        %v546 = vadd.f32 %v357, %v490
        %v547 = vadd.f32 %v358, %v493
        %v548 = vadd.f32 %v359, %v498
        %v549 = vadd.f32 %v360, %v501
        %v550 = vadd.f32 %v361, %v506
        %v551 = vadd.f32 %v362, %v509
        %v552 = vadd.f32 %v363, %v514
        %v553 = vadd.f32 %v364, %v517
        %v554 = vadd.f32 %v365, %v522
        %v555 = vadd.f32 %v366, %v525
        %v556 = vadd.f32 %v367, %v530
        %v557 = vadd.f32 %v368, %v533
        %v558 = vadd.f32 %v369, %v538
        %v559 = vadd.f32 %v370, %v541
        %560 = vst [vmem:[#allocation2] sm:$0xff] %v544
        %561 = vst [vmem:[#allocation2 + $0x8] sm:$0xff] %v545
        %562 = vst [vmem:[#allocation2 + $0x10] sm:$0xff] %v546
        %563 = vst [vmem:[#allocation2 + $0x18] sm:$0xff] %v547
        %564 = vst [vmem:[#allocation2 + $0x20] sm:$0xff] %v548
        %565 = vst [vmem:[#allocation2 + $0x28] sm:$0xff] %v549
        %566 = vst [vmem:[#allocation2 + $0x30] sm:$0xff] %v550
        %567 = vst [vmem:[#allocation2 + $0x38] sm:$0xff] %v551
        %568 = vst [vmem:[#allocation2 + $0x40] sm:$0xff] %v552
        %569 = vst [vmem:[#allocation2 + $0x48] sm:$0xff] %v553
        %570 = vst [vmem:[#allocation2 + $0x50] sm:$0xff] %v554
        %571 = vst [vmem:[#allocation2 + $0x58] sm:$0xff] %v555
        %572 = vst [vmem:[#allocation2 + $0x60] sm:$0xff] %v556
        %573 = vst [vmem:[#allocation2 + $0x68] sm:$0xff] %v557
        %574 = vst [vmem:[#allocation2 + $0x70] sm:$0xff] %v558
        %575 = vst [vmem:[#allocation2 + $0x78] sm:$0xff] %v559
        %p576 = scmp.eq.s32.totalorder %s21, 1
        // Predicated region
        $region83: #{_gcn_atp_conv_impl.1} parent=73 // pred_check
          %p577 = pneg %p576
        $region84: #{_gcn_atp_conv_impl.1} parent=73 // pred_check_branch
          %579 = sbr.rel (%p577) target = $region86
        $region85: #{_gcn_atp_conv_impl.1} parent=73 // pred_region
          %v580 = vld [vmem:[%s326] sm:$0xff]
          %v581 = vld [vmem:[%s326 + $0x8] sm:$0xff]
          %v582 = vld [vmem:[%s326 + $0x10] sm:$0xff]
          %v583 = vld [vmem:[%s326 + $0x18] sm:$0xff]
          %v584 = vld [vmem:[%s326 + $0x20] sm:$0xff]
          %v585 = vld [vmem:[%s326 + $0x28] sm:$0xff]
          %v586 = vld [vmem:[%s326 + $0x30] sm:$0xff]
          %v587 = vld [vmem:[%s326 + $0x38] sm:$0xff]
          %v588 = vld [vmem:[%s326 + $0x40] sm:$0xff]
          %v589 = vld [vmem:[%s326 + $0x48] sm:$0xff]
          %v590 = vld [vmem:[%s326 + $0x50] sm:$0xff]
          %v591 = vld [vmem:[%s326 + $0x58] sm:$0xff]
          %v592 = vld [vmem:[%s326 + $0x60] sm:$0xff]
          %v593 = vld [vmem:[%s326 + $0x68] sm:$0xff]
          %v594 = vld [vmem:[%s326 + $0x70] sm:$0xff]
          %v595 = vld [vmem:[%s326 + $0x78] sm:$0xff]
          %v596 = vld [vmem:[#allocation2] sm:$0xff]
          %v597 = vld [vmem:[#allocation2 + $0x8] sm:$0xff]
          %v598 = vld [vmem:[#allocation2 + $0x10] sm:$0xff]
          %v599 = vld [vmem:[#allocation2 + $0x18] sm:$0xff]
          %v600 = vld [vmem:[#allocation2 + $0x20] sm:$0xff]
          %v601 = vld [vmem:[#allocation2 + $0x28] sm:$0xff]
          %v602 = vld [vmem:[#allocation2 + $0x30] sm:$0xff]
          %v603 = vld [vmem:[#allocation2 + $0x38] sm:$0xff]
          %v604 = vld [vmem:[#allocation2 + $0x40] sm:$0xff]
          %v605 = vld [vmem:[#allocation2 + $0x48] sm:$0xff]
          %v606 = vld [vmem:[#allocation2 + $0x50] sm:$0xff]
          %v607 = vld [vmem:[#allocation2 + $0x58] sm:$0xff]
          %v608 = vld [vmem:[#allocation2 + $0x60] sm:$0xff]
          %v609 = vld [vmem:[#allocation2 + $0x68] sm:$0xff]
          %v610 = vld [vmem:[#allocation2 + $0x70] sm:$0xff]
          %v611 = vld [vmem:[#allocation2 + $0x78] sm:$0xff]
          %613 = vset.pattern.permute.xlu0 0
          %614 = vperm.xlu0 %613, %v580
          %v615 = vpop.permute.xlu0 %614
          %618 = vset.pattern.permute.xlu0 0
          %619 = vperm.xlu0 %618, %v581
          %v620 = vpop.permute.xlu0 %619
          %623 = vset.pattern.permute.xlu0 0
          %624 = vperm.xlu0 %623, %v582
          %v625 = vpop.permute.xlu0 %624
          %628 = vset.pattern.permute.xlu0 0
          %629 = vperm.xlu0 %628, %v583
          %v630 = vpop.permute.xlu0 %629
          %633 = vset.pattern.permute.xlu0 0
          %634 = vperm.xlu0 %633, %v584
          %v635 = vpop.permute.xlu0 %634
          %638 = vset.pattern.permute.xlu0 0
          %639 = vperm.xlu0 %638, %v585
          %v640 = vpop.permute.xlu0 %639
          %643 = vset.pattern.permute.xlu0 0
          %644 = vperm.xlu0 %643, %v586
          %v645 = vpop.permute.xlu0 %644
          %648 = vset.pattern.permute.xlu0 0
          %649 = vperm.xlu0 %648, %v587
          %v650 = vpop.permute.xlu0 %649
          %653 = vset.pattern.permute.xlu0 0
          %654 = vperm.xlu0 %653, %v588
          %v655 = vpop.permute.xlu0 %654
          %658 = vset.pattern.permute.xlu0 0
          %659 = vperm.xlu0 %658, %v589
          %v660 = vpop.permute.xlu0 %659
          %663 = vset.pattern.permute.xlu0 0
          %664 = vperm.xlu0 %663, %v590
          %v665 = vpop.permute.xlu0 %664
          %668 = vset.pattern.permute.xlu0 0
          %669 = vperm.xlu0 %668, %v591
          %v670 = vpop.permute.xlu0 %669
          %673 = vset.pattern.permute.xlu0 0
          %674 = vperm.xlu0 %673, %v592
          %v675 = vpop.permute.xlu0 %674
          %678 = vset.pattern.permute.xlu0 0
          %679 = vperm.xlu0 %678, %v593
          %v680 = vpop.permute.xlu0 %679
          %683 = vset.pattern.permute.xlu0 0
          %684 = vperm.xlu0 %683, %v594
          %v685 = vpop.permute.xlu0 %684
          %688 = vset.pattern.permute.xlu0 0
          %689 = vperm.xlu0 %688, %v595
          %v690 = vpop.permute.xlu0 %689
          %v692 = vmul.f32 %v615, %v596
          %v693 = vmul.f32 %v620, %v597
          %v694 = vmul.f32 %v625, %v598
          %v695 = vmul.f32 %v630, %v599
          %v696 = vmul.f32 %v635, %v600
          %v697 = vmul.f32 %v640, %v601
          %v698 = vmul.f32 %v645, %v602
          %v699 = vmul.f32 %v650, %v603
          %v700 = vmul.f32 %v655, %v604
          %v701 = vmul.f32 %v660, %v605
          %v702 = vmul.f32 %v665, %v606
          %v703 = vmul.f32 %v670, %v607
          %v704 = vmul.f32 %v675, %v608
          %v705 = vmul.f32 %v680, %v609
          %v706 = vmul.f32 %v685, %v610
          %v707 = vmul.f32 %v690, %v611
          %v708 = vpack.c.bf16 %v693, %v692
          %v709 = vpack.c.bf16 %v695, %v694
          %v710 = vpack.c.bf16 %v697, %v696
          %v711 = vpack.c.bf16 %v699, %v698
          %v712 = vpack.c.bf16 %v701, %v700
          %v713 = vpack.c.bf16 %v703, %v702
          %v714 = vpack.c.bf16 %v705, %v704
          %v715 = vpack.c.bf16 %v707, %v706
          %v716 = vld [vmem:[%s3] sm:$0xf]
          %v717 = vld [vmem:[%s3 + $0x4] sm:$0xf]
          %v718 = vld [vmem:[%s3 + $0x8] sm:$0xf]
          %v719 = vld [vmem:[%s3 + $0xc] sm:$0xf]
          %v720 = vld [vmem:[%s3 + $0x10] sm:$0xf]
          %v721 = vld [vmem:[%s3 + $0x14] sm:$0xf]
          %v722 = vld [vmem:[%s3 + $0x18] sm:$0xf]
          %v723 = vld [vmem:[%s3 + $0x1c] sm:$0xf]
          %v724 = vld [vmem:[%s3 + $0x20] sm:$0xf]
          %v725 = vld [vmem:[%s3 + $0x24] sm:$0xf]
          %v726 = vld [vmem:[%s3 + $0x28] sm:$0xf]
          %v727 = vld [vmem:[%s3 + $0x2c] sm:$0xf]
          %v728 = vld [vmem:[%s3 + $0x30] sm:$0xf]
          %v729 = vld [vmem:[%s3 + $0x34] sm:$0xf]
          %v730 = vld [vmem:[%s3 + $0x38] sm:$0xf]
          %v731 = vld [vmem:[%s3 + $0x3c] sm:$0xf]
          %v732 = vld [vmem:[%s4] sm:$0x1]
          %v734 = vlaneseq
          %v735 = vshrl.u32 %v734, 7
          %v736 = vsub.s32 0, %v735
          %v737 = vrot.slane %v732, %v736
          %v755 = vunpack.c.l.b16 %v716
          %v756 = vunpack.c.l.b16 %v717
          %v757 = vunpack.c.l.b16 %v718
          %v758 = vunpack.c.l.b16 %v719
          %v759 = vunpack.c.l.b16 %v720
          %v760 = vunpack.c.l.b16 %v721
          %v761 = vunpack.c.l.b16 %v722
          %v762 = vunpack.c.l.b16 %v723
          %v763 = vunpack.c.l.b16 %v724
          %v764 = vunpack.c.l.b16 %v725
          %v765 = vunpack.c.l.b16 %v726
          %v766 = vunpack.c.l.b16 %v727
          %v767 = vunpack.c.l.b16 %v728
          %v768 = vunpack.c.l.b16 %v729
          %v769 = vunpack.c.l.b16 %v730
          %v770 = vunpack.c.l.b16 %v731
          %v771 = vpack.c.b16 %v756, %v755
          %v772 = vpack.c.b16 %v758, %v757
          %v773 = vpack.c.b16 %v760, %v759
          %v774 = vpack.c.b16 %v762, %v761
          %v775 = vpack.c.b16 %v764, %v763
          %v776 = vpack.c.b16 %v766, %v765
          %v777 = vpack.c.b16 %v768, %v767
          %v778 = vpack.c.b16 %v770, %v769
          %787 = vmatprep.subr.bf16.mxu0 0
          %788 = vmatpush1.bf16.msra.mxu0 %v771
          %789 = vmatprep.subr.bf16.mxu0 0
          %790 = vmatpush1.bf16.msra.mxu0 %v772
          %791 = vmatprep.subr.bf16.mxu0 0
          %792 = vmatpush1.bf16.msra.mxu0 %v773
          %793 = vmatprep.subr.bf16.mxu0 0
          %794 = vmatpush1.bf16.msra.mxu0 %v774
          %795 = vmatprep.subr.bf16.mxu0 0
          %796 = vmatpush1.bf16.msra.mxu0 %v775
          %797 = vmatprep.subr.bf16.mxu0 0
          %798 = vmatpush1.bf16.msra.mxu0 %v776
          %799 = vmatprep.subr.bf16.mxu0 0
          %800 = vmatpush1.bf16.msra.mxu0 %v777
          %801 = vmatprep.subr.bf16.mxu0 0
          %802 = vmatpush1.bf16.msra.mxu0 %v778
          %803 = vmatprep.subr.bf16.mxu0 0
          %804 = vmatpush1.bf16.msra.mxu0 0
          %805 = vmatprep.subr.bf16.mxu0 0
          %806 = vmatpush1.bf16.msra.mxu0 0
          %807 = vmatprep.subr.bf16.mxu0 0
          %808 = vmatpush1.bf16.msra.mxu0 0
          %809 = vmatprep.subr.bf16.mxu0 0
          %810 = vmatpush1.bf16.msra.mxu0 0
          %811 = vmatprep.subr.bf16.mxu0 0
          %812 = vmatpush1.bf16.msra.mxu0 0
          %813 = vmatprep.subr.bf16.mxu0 0
          %814 = vmatpush1.bf16.msra.mxu0 0
          %815 = vmatprep.subr.bf16.mxu0 0
          %816 = vmatpush1.bf16.msra.mxu0 0
          %817 = vmatprep.subr.bf16.mxu0 0
          %818 = vmatpush1.bf16.msra.mxu0 0
          %819 = vmatprep.mubr.bf16.mxu0 0
          %820 = vmatmul.mubr.bf16.gmra.mrb[0].mxu0 %v708
          %v821 = vpop.f32.mrb[0].mxu0
          %v822 = vadd.f32 %v737, %v821
          %v823 = vpop.f32.mrb[0].mxu0
          %v824 = vpop.f32.mrb[0].mxu0
          %v825 = vadd.f32 %v737, %v824
          %v826 = vpop.f32.mrb[0].mxu0
          %827 = vmatprep.mubr.bf16.mxu0 0
          %828 = vmatmul.mubr.bf16.gmra.mrb[0].mxu0 %v709
          %v829 = vpop.f32.mrb[0].mxu0
          %v830 = vadd.f32 %v737, %v829
          %v831 = vpop.f32.mrb[0].mxu0
          %v832 = vpop.f32.mrb[0].mxu0
          %v833 = vadd.f32 %v737, %v832
          %v834 = vpop.f32.mrb[0].mxu0
          %835 = vmatprep.mubr.bf16.mxu0 0
          %836 = vmatmul.mubr.bf16.gmra.mrb[0].mxu0 %v710
          %v837 = vpop.f32.mrb[0].mxu0
          %v838 = vadd.f32 %v737, %v837
          %v839 = vpop.f32.mrb[0].mxu0
          %v840 = vpop.f32.mrb[0].mxu0
          %v841 = vadd.f32 %v737, %v840
          %v842 = vpop.f32.mrb[0].mxu0
          %843 = vmatprep.mubr.bf16.mxu0 0
          %844 = vmatmul.mubr.bf16.gmra.mrb[0].mxu0 %v711
          %v845 = vpop.f32.mrb[0].mxu0
          %v846 = vadd.f32 %v737, %v845
          %v847 = vpop.f32.mrb[0].mxu0
          %v848 = vpop.f32.mrb[0].mxu0
          %v849 = vadd.f32 %v737, %v848
          %v850 = vpop.f32.mrb[0].mxu0
          %851 = vmatprep.mubr.bf16.mxu0 0
          %852 = vmatmul.mubr.bf16.gmra.mrb[0].mxu0 %v712
          %v853 = vpop.f32.mrb[0].mxu0
          %v854 = vadd.f32 %v737, %v853
          %v855 = vpop.f32.mrb[0].mxu0
          %v856 = vpop.f32.mrb[0].mxu0
          %v857 = vadd.f32 %v737, %v856
          %v858 = vpop.f32.mrb[0].mxu0
          %859 = vmatprep.mubr.bf16.mxu0 0
          %860 = vmatmul.mubr.bf16.gmra.mrb[0].mxu0 %v713
          %v861 = vpop.f32.mrb[0].mxu0
          %v862 = vadd.f32 %v737, %v861
          %v863 = vpop.f32.mrb[0].mxu0
          %v864 = vpop.f32.mrb[0].mxu0
          %v865 = vadd.f32 %v737, %v864
          %v866 = vpop.f32.mrb[0].mxu0
          %867 = vmatprep.mubr.bf16.mxu0 0
          %868 = vmatmul.mubr.bf16.gmra.mrb[0].mxu0 %v714
          %v869 = vpop.f32.mrb[0].mxu0
          %v870 = vadd.f32 %v737, %v869
          %v871 = vpop.f32.mrb[0].mxu0
          %v872 = vpop.f32.mrb[0].mxu0
          %v873 = vadd.f32 %v737, %v872
          %v874 = vpop.f32.mrb[0].mxu0
          %875 = vmatprep.mubr.bf16.mxu0 0
          %876 = vmatmul.mubr.bf16.gmra.mrb[0].mxu0 %v715
          %v877 = vpop.f32.mrb[0].mxu0
          %v878 = vadd.f32 %v737, %v877
          %v879 = vpop.f32.mrb[0].mxu0
          %v880 = vpop.f32.mrb[0].mxu0
          %v881 = vadd.f32 %v737, %v880
          %v882 = vpop.f32.mrb[0].mxu0
          %883 = vdwg.mxu0
          %884 = vst [vmem:[%s332] sm:$0xff] %v822
          %885 = vst [vmem:[%s332 + $0x8] sm:$0xff] %v825
          %886 = vst [vmem:[%s332 + $0x10] sm:$0xff] %v830
          %887 = vst [vmem:[%s332 + $0x18] sm:$0xff] %v833
          %888 = vst [vmem:[%s332 + $0x20] sm:$0xff] %v838
          %889 = vst [vmem:[%s332 + $0x28] sm:$0xff] %v841
          %890 = vst [vmem:[%s332 + $0x30] sm:$0xff] %v846
          %891 = vst [vmem:[%s332 + $0x38] sm:$0xff] %v849
          %892 = vst [vmem:[%s332 + $0x40] sm:$0xff] %v854
          %893 = vst [vmem:[%s332 + $0x48] sm:$0xff] %v857
          %894 = vst [vmem:[%s332 + $0x50] sm:$0xff] %v862
          %895 = vst [vmem:[%s332 + $0x58] sm:$0xff] %v865
          %896 = vst [vmem:[%s332 + $0x60] sm:$0xff] %v870
          %897 = vst [vmem:[%s332 + $0x68] sm:$0xff] %v873
          %898 = vst [vmem:[%s332 + $0x70] sm:$0xff] %v878
          %899 = vst [vmem:[%s332 + $0x78] sm:$0xff] %v881
        $region86: #{_gcn_atp_conv_impl.1} parent=73 // pred_fallthru
          _
        %s900 = smul.u32 16, %s20
        %p901 = scmp.lt.s32.totalorder %s900, 31
        %s902 = scalar_select %p901, %s900, 31
        %s903 = smul.addr %s902, 8
        %s904 = scalar_lea.vmem %s5, %s903
        // Predicated region
        $region87: #{_gcn_atp_conv_impl.1} parent=73 // pred_check
          %p905 = pneg %p168
        $region88: #{_gcn_atp_conv_impl.1} parent=73 // pred_check_branch
          %907 = sbr.rel (%p905) target = $region90
        $region89: #{_gcn_atp_conv_impl.1} parent=73 // pred_region
          %s908 = smul.u32 16, %s20
        $region90: #{_gcn_atp_conv_impl.1} parent=73 // pred_fallthru
          _
      $region74: #{_gcn_atp_conv_impl.1} parent=5 // pred_fallthru
        _
      %p909 = scmp.le.s32.totalorder 2, %s11
      // Predicated region
      $region91: #{_gcn_atp_conv_impl.1} parent=5 // pred_check
        %p910 = pneg %p909
      $region92: #{_gcn_atp_conv_impl.1} parent=5 // pred_check_branch
        %912 = sbr.rel (%p910) target = $region94
      $region93: #{_gcn_atp_conv_impl.1} parent=5 // pred_region
        %s913 = ssub.s32 %s11, 2
        // Predicated region
        $region95: #{_gcn_atp_conv_impl.1} parent=93 // pred_check
          %p914 = pneg %p174
        $region96: #{_gcn_atp_conv_impl.1} parent=93 // pred_check_branch
          %916 = sbr.rel (%p914) target = $region98
        $region97: #{_gcn_atp_conv_impl.1} parent=93 // pred_region
          %s917 = smul.u32 16, %s22
          %p918 = scmp.lt.s32.totalorder %s917, 31
          %s919 = scalar_select %p918, %s917, 31
          %s920 = smul.addr %s919, 8
          %s921 = scalar_lea.vmem %s5, %s920
        $region98: #{_gcn_atp_conv_impl.1} parent=93 // pred_fallthru
          _
      $region94: #{_gcn_atp_conv_impl.1} parent=5 // pred_fallthru
        _
    $region6: #{_gcn_atp_conv_impl.1} parent=1 // loop_footer
      %s15 = sadd.s32 1, %s11
    $region7: #{_gcn_atp_conv_impl.1} parent=1 // loop_footer_branch
      %10 = sbr.rel target = $region3
    $region8: #{_gcn_atp_conv_impl.1} parent=1 // loop_exit
      _

</llo_original>
